<compile_context>
chip_gen: v7x
topology: tpu7x:2x2x1
jax: 0.10.0
libtpu: 0.0.40
codegen_flags: <defaults>
</compile_context>

<pallas_src>
import functools

import jax
import jax.numpy as jnp
from jax.experimental import pallas as pl
from jax.experimental.pallas import tpu as pltpu


_CPAD = 128  # per-task class padding -> lane-dense stores / sane MXU N dim


def _fused_heads_kernel(x_ref, mask_ref, w_ref, b_ref, o_ref,
                        sum_ref, cnt_ref, *, num_tasks, cpad):
    """Fused multi-task classifier heads, one (batch, sequence) tile per step.

    Grid = (batch tiles, sequence tiles); the sequence axis is a reduction:
    masked sums accumulate in VMEM scratch, the matmul + per-task log-softmax
    run only on the last sequence step.

    x_ref:    (TB, TL, D)           native dtype (bf16/f32) embedding tile
    mask_ref: (TB, TL)              float32, 1.0 = valid token, 0.0 = padding
    w_ref:    (D, num_tasks*cpad)   float32 concatenated padded task weights
    b_ref:    (1, num_tasks*cpad)   float32 biases (-1e30 on padded columns)
    o_ref:    (TB, num_tasks*cpad)  float32 per-task log-probabilities
    sum_ref:  (TB, D)               float32 scratch: running masked sum
    cnt_ref:  (TB, 1)               float32 scratch: running valid-token count
    """
    l = pl.program_id(1)

    @pl.when(l == 0)
    def _():
        sum_ref[...] = jnp.zeros_like(sum_ref)
        cnt_ref[...] = jnp.zeros_like(cnt_ref)

    # Per-tile cast: x streams over HBM in its native dtype (e.g. bf16).
    x = x_ref[...].astype(jnp.float32)                       # (TB, TL, D)
    m = mask_ref[...]                                        # (TB, TL)

    sum_ref[...] += jnp.sum(x * m[:, :, None], axis=1)       # (TB, D)
    cnt_ref[...] += jnp.sum(m, axis=1, keepdims=True)        # (TB, 1)

    @pl.when(l == pl.num_programs(1) - 1)
    def _():
        # Exact division: the (TB,1) reciprocal is not performance-relevant.
        pooled = sum_ref[...] / jnp.maximum(cnt_ref[...], 1.0)

        # One lane-dense MXU matmul for all task heads at once.
        logits = jnp.dot(pooled, w_ref[...],
                         preferred_element_type=jnp.float32) + b_ref[...]

        # Per-task numerically stable log-softmax over each 128-lane segment.
        # Padded class columns carry a -1e30 bias -> exp underflows to 0 and
        # the normalizer only sees real classes.  Padded output lanes hold
        # ~-1e30; the wrapper slices them away.
        for t in range(num_tasks):
            seg = logits[:, t * cpad:(t + 1) * cpad]          # static 128-lane slice
            mx = jnp.max(seg, axis=-1, keepdims=True)
            z = seg - mx
            lse = jnp.log(jnp.sum(jnp.exp(z), axis=-1, keepdims=True))
            o_ref[:, t * cpad:(t + 1) * cpad] = z - lse       # lane-aligned store


def _vmem_capacity_bytes():
    """Per-core VMEM capacity; conservative fallback if the query fails."""
    try:
        cap = int(pltpu.get_tpu_info().vmem_capacity_bytes)
        if cap > 0:
            return cap
    except Exception:
        pass
    return 64 << 20  # v7x per-TensorCore VMEM (smallest current part)


def _pick_tiles(batch, length, dim, x_esize, vmem_cap):
    """Choose (TB, TL): batch tile and sequence tile.

    * Per-step x block targets ~vmem_cap/8 bytes so double-buffered streaming
      + in-kernel f32 temporaries + weights stay well inside VMEM
      (generation-aware: ~16 MiB on 128 MiB parts, ~8 MiB on 64 MiB v7x).
    * TL is the whole sequence or a multiple-of-128 divisor of L, so sequence
      tiles never pull out-of-bounds rows into the running sum.
    * TB is a multiple of 8 (or the whole batch); the batch grid is a cdiv
      grid -- partial last tiles are fine (row-local compute, OOB rows dropped).
    * TB is capped so the batch grid has >= ~4 steps when possible, letting
      dimension_semantics=("parallel", ...) shard across both v7x TensorCores.
    """
    target = max(vmem_cap // 8, 1 << 20)
    row_bytes = dim * x_esize

    if length <= 128 or 8 * length * row_bytes <= target:
        tl = length
    else:
        tl = 0
        for cand in range((length // 128) * 128, 0, -128):
            if length % cand == 0 and 8 * cand * row_bytes <= target:
                tl = cand
                break
        if tl == 0:
            # No friendly divisor fits: smallest lane-aligned divisor or the
            # full sequence.  TODO(synk): pad L in HBM for pathological
            # (huge, prime-ish) sequence lengths.
            tl = 128 if length % 128 == 0 else length

    rows = max(1, target // max(1, tl * row_bytes))
    tb = min(batch, max(8, (rows // 8) * 8))

    if batch > 8:
        cap = max(8, ((pl.cdiv(batch, 4) + 7) // 8) * 8)
        tb = min(tb, cap)

    if tb >= batch:
        tb = batch
    else:
        tb = max(8, (tb // 8) * 8)
    return tb, tl


def multitask_heads_forward(x, valid_mask, w_all, b_all, *, num_tasks, cpad=_CPAD):
    """Run all fused task heads.  x: (B, L, D) -> (B, num_tasks*cpad) log-probs."""
    B, L, D = x.shape
    CP = w_all.shape[1]
    assert CP == num_tasks * cpad

    x_esize = jnp.dtype(x.dtype).itemsize
    vmem_cap = _vmem_capacity_bytes()
    TB, TL = _pick_tiles(B, L, D, x_esize, vmem_cap)
    grid = (pl.cdiv(B, TB), pl.cdiv(L, TL))

    # Explicit VMEM budget: double-buffered streaming tiles, in-kernel f32
    # temporaries (cast + x*m product), weights/bias, scratch, headroom --
    # capped at 80% of physical VMEM so compiler scratch never overflows v7x.
    x_blk = TB * TL * D * x_esize
    x_tmp = 2 * TB * TL * D * 4
    m_blk = TB * TL * 4
    o_blk = TB * CP * 4
    w_bytes = (D * CP + CP) * 4
    scr = TB * D * 4 + TB * 128 * 4
    need = 2 * (x_blk + m_blk + o_blk) + x_tmp + 2 * w_bytes + scr + (4 << 20)
    vmem_limit = int(min(max(need, 16 << 20), (vmem_cap * 4) // 5))

    kernel = functools.partial(_fused_heads_kernel, num_tasks=num_tasks, cpad=cpad)

    def build(single_buffer_weights):
        if single_buffer_weights:
            # Grid-invariant weights/bias: single-buffer (their index_map is
            # constant, double-buffering them just wastes VMEM).
            w_spec = pl.BlockSpec((D, CP), lambda i, l: (0, 0),
                                  pipeline_mode=pl.Buffered(1))
            b_spec = pl.BlockSpec((1, CP), lambda i, l: (0, 0),
                                  pipeline_mode=pl.Buffered(1))
        else:
            w_spec = pl.BlockSpec((D, CP), lambda i, l: (0, 0))
            b_spec = pl.BlockSpec((1, CP), lambda i, l: (0, 0))

        return pl.pallas_call(
            kernel,
            out_shape=jax.ShapeDtypeStruct((B, CP), jnp.float32),
            grid=grid,
            in_specs=[
                pl.BlockSpec((TB, TL, D), lambda i, l: (i, l, 0)),  # streamed x
                pl.BlockSpec((TB, TL), lambda i, l: (i, l)),        # mask tile
                w_spec,                                             # resident W
                b_spec,                                             # resident b
            ],
            out_specs=pl.BlockSpec((TB, CP), lambda i, l: (i, 0)),  # resident out
            scratch_shapes=[
                pltpu.VMEM((TB, D), jnp.float32),   # running masked sum
                pltpu.VMEM((TB, 1), jnp.float32),   # running token count
            ],
            compiler_params=pltpu.CompilerParams(
                dimension_semantics=("parallel", "arbitrary"),
                vmem_limit_bytes=vmem_limit,
            ),
        )

    try:
        return build(True)(x, valid_mask, w_all, b_all)
    except Exception:
        # pl.Buffered(1) not supported on this jax version: fall back to the
        # default double-buffered specs (same semantics, slightly more VMEM).
        return build(False)(x, valid_mask, w_all, b_all)


class MultiTaskNetPallas:
    """JAX/Pallas equivalent of MultiTaskNet.forward().

    Each task head: masked mean-pool over the sequence (padding_mask,
    1 = valid token) -> linear -> log_softmax.  All heads run fused in one
    pallas_call over the whole batch; per-task batch/column slicing happens
    afterwards, matching the PyTorch per-slice semantics exactly (the
    log-softmax is computed per 128-lane task segment inside the kernel).

    task_params: dict {task_name: (W of shape (D, C), b of shape (1, C) or (C,))}
    """

    def __init__(self, task_params):
        self.task_names = list(task_params.keys())
        self.num_tasks = len(self.task_names)
        self.num_classes = {}

        ws, bs = [], []
        for name in self.task_names:
            w, b = task_params[name]
            D, C = w.shape
            assert C <= _CPAD, "class count must fit one 128-lane segment"
            self.num_classes[name] = C
            w_p = jnp.zeros((D, _CPAD), jnp.float32).at[:, :C].set(
                w.astype(jnp.float32))
            # -1e30 on padded columns -> padded logits never affect log-softmax.
            b_p = jnp.full((1, _CPAD), -1e30, jnp.float32).at[:, :C].set(
                jnp.reshape(b, (1, C)).astype(jnp.float32))
            ws.append(w_p)
            bs.append(b_p)

        # TODO(synk): when sum(C_t) <= 128 all heads could share one 128-lane
        # segment (T x smaller output/weights); kept per-task segments for
        # generality with many-class tasks.
        self.w_all = jnp.concatenate(ws, axis=1)   # (D, T*128)
        self.b_all = jnp.concatenate(bs, axis=1)   # (1, T*128)

    def forward(self, inp, batch_slices=None, masks_dict=None):
        assert batch_slices is not None
        assert masks_dict is not None

        # Only padding_mask is consumed (1 = valid token).  Cast the tiny
        # (B, L) mask to f32 (traffic ~1/(2D) of x, keeps block layout legal);
        # x itself streams through the kernel in its NATIVE dtype -- no
        # wrapper-side astype copy of the dominant tensor.
        valid = masks_dict["padding_mask"].astype(jnp.float32)

        logp_all = multitask_heads_forward(
            inp, valid, self.w_all, self.b_all, num_tasks=self.num_tasks)

        output = {}
        for t, name in enumerate(self.task_names):
            sl = batch_slices[name]
            rows = logp_all[sl]
            if rows.shape[0] > 0:
                C = self.num_classes[name]
                output[name] = rows[:, t * _CPAD: t * _CPAD + C]
        return output


def _reference_forward(inp, padding_mask, task_params, batch_slices):
    """Pure-JAX reference: per-task masked mean pool + linear + log_softmax."""
    out = {}
    x_all = inp.astype(jnp.float32)
    valid = padding_mask.astype(jnp.float32)
    for name, (w, b) in task_params.items():
        sl = batch_slices[name]
        x = x_all[sl]
        m = valid[sl]
        if x.shape[0] == 0:
            continue
        pooled = (x * m[:, :, None]).sum(1) / jnp.maximum(
            m.sum(1, keepdims=True), 1.0)
        logits = pooled @ w.astype(jnp.float32) + jnp.reshape(b, (1, -1))
        out[name] = jax.nn.log_softmax(logits, axis=-1)
    return out


if __name__ == "__main__":
    key = jax.random.PRNGKey(0)
    k_inp, k_wa, k_ba, k_wb, k_bb, k_mask = jax.random.split(key, 6)

    B, L, D = 12, 16, 128       # batch, seq length, embedding dim
    C_A, C_B = 3, 4             # num classes per task

    # Embeddings in bf16: the kernel streams x in its native dtype and casts
    # per-tile on-chip (half the HBM traffic of a wrapper-side f32 copy).
    inp = jax.random.normal(k_inp, (B, L, D), dtype=jnp.float32).astype(jnp.bfloat16)

    # Masks (uint8 like PyTorch); padding_mask: 1 = valid token.
    padding_mask = (jax.random.uniform(k_mask, (B, L)) > 0.2).astype(jnp.uint8)
    padding_mask = padding_mask.at[:, 0].set(1)  # at least one valid token / row
    masks_dict = {
        "padding_mask": padding_mask,
        "seq_pair_mask": jnp.zeros((B, L), dtype=jnp.uint8),
        "regular_tokens_mask": padding_mask,
    }

    task_params = {
        "task_a": (
            jax.random.normal(k_wa, (D, C_A), dtype=jnp.float32) * 0.05,
            jax.random.normal(k_ba, (1, C_A), dtype=jnp.float32) * 0.01,
        ),
        "task_b": (
            jax.random.normal(k_wb, (D, C_B), dtype=jnp.float32) * 0.05,
            jax.random.normal(k_bb, (1, C_B), dtype=jnp.float32) * 0.01,
        ),
    }

    batch_slices = {"task_a": slice(0, 7), "task_b": slice(7, 12)}

    net = MultiTaskNetPallas(task_params)
    out = net.forward(inp, batch_slices=batch_slices, masks_dict=masks_dict)
    for v in out.values():
        jax.block_until_ready(v)

    # Shape + normalization checks (log-probs must exponentiate to 1).
    assert out["task_a"].shape == (7, C_A)
    assert out["task_b"].shape == (5, C_B)
    assert jnp.allclose(jnp.sum(jnp.exp(out["task_a"]), axis=-1), 1.0, atol=1e-4)
    assert jnp.allclose(jnp.sum(jnp.exp(out["task_b"]), axis=-1), 1.0, atol=1e-4)

    # Match the pure-JAX reference.  Pooling now uses exact division; the
    # residual tolerance only covers default-precision MXU matmul differences
    # (Pallas dot vs XLA reference dot) on bf16-sourced inputs.
    ref = _reference_forward(inp, padding_mask, task_params, batch_slices)
    for name in ref:
        assert jnp.allclose(out[name], ref[name], atol=1e-2, rtol=1e-2), name

    print("KERNEL_OK")
</pallas_src>

<mosaic_0001>
module attributes {stable_mosaic.version = 11 : i64} {
  func.func @_fused_heads_kernel(%arg0: i32, %arg1: i32, %arg2: memref<8x16x128xbf16, #tpu.memory_space<vmem>>, %arg3: memref<8x16xf32, #tpu.memory_space<vmem>>, %arg4: memref<128x256xf32, #tpu.memory_space<vmem>>, %arg5: memref<1x256xf32, #tpu.memory_space<vmem>>, %arg6: memref<8x256xf32, #tpu.memory_space<vmem>>, %arg7: memref<8x128xf32, #tpu.memory_space<vmem>>, %arg8: memref<8x1xf32, #tpu.memory_space<vmem>>) attributes {dimension_semantics = [#tpu.dimension_semantics<parallel>, #tpu.dimension_semantics<arbitrary>], iteration_bounds = array<i64: 2, 1>, scalar_prefetch = 0 : i64, scratch_operands = 2 : i64, tpu.core_type = #tpu.core_type<tc>, window_params = [{transform_indices = @transform_0, window_bounds = array<i64: 8, 16, 128>}, {transform_indices = @transform_1, window_bounds = array<i64: 8, 16>}, {pipeline_mode = #tpu.pipeline_mode<synchronous>, transform_indices = @transform_2, window_bounds = array<i64: 128, 256>}, {pipeline_mode = #tpu.pipeline_mode<synchronous>, transform_indices = @transform_3, window_bounds = array<i64: 1, 256>}, {transform_indices = @transform_4, window_bounds = array<i64: 8, 256>}]} {
    %c0_i32 = arith.constant 0 : i32
    %0 = arith.cmpi eq, %arg1, %c0_i32 : i32
    %1 = arith.extui %0 : i1 to i32
    %c0_i32_0 = arith.constant 0 : i32
    %2 = arith.cmpi ne, %1, %c0_i32_0 : i32
    scf.if %2 {
      %cst_16 = arith.constant 0.000000e+00 : f32
      %21 = vector.broadcast %cst_16 : f32 to vector<8x128xf32>
      %c0_17 = arith.constant 0 : index
      %c0_18 = arith.constant 0 : index
      %22 = vector.load %arg7[%c0_17, %c0_18] : memref<8x128xf32, #tpu.memory_space<vmem>>, vector<8x128xf32>
      tpu.vector_store %arg7[%c0_17, %c0_18], %21 {strides = array<i32>} : memref<8x128xf32, #tpu.memory_space<vmem>>, vector<8x128xf32>,
      %cst_19 = arith.constant 0.000000e+00 : f32
      %23 = vector.broadcast %cst_19 : f32 to vector<8x1xf32>
      %c0_20 = arith.constant 0 : index
      %c0_21 = arith.constant 0 : index
      %24 = vector.load %arg8[%c0_20, %c0_21] : memref<8x1xf32, #tpu.memory_space<vmem>>, vector<8x1xf32>
      tpu.vector_store %arg8[%c0_20, %c0_21], %23 {strides = array<i32>} : memref<8x1xf32, #tpu.memory_space<vmem>>, vector<8x1xf32>,
    } else {
    }
    %c0 = arith.constant 0 : index
    %c0_1 = arith.constant 0 : index
    %c0_2 = arith.constant 0 : index
    %3 = vector.load %arg2[%c0, %c0_1, %c0_2] : memref<8x16x128xbf16, #tpu.memory_space<vmem>>, vector<8x16x128xbf16>
    %4 = arith.extf %3 : vector<8x16x128xbf16> to vector<8x16x128xf32>
    %c0_3 = arith.constant 0 : index
    %c0_4 = arith.constant 0 : index
    %5 = vector.load %arg3[%c0_3, %c0_4] : memref<8x16xf32, #tpu.memory_space<vmem>>, vector<8x16xf32>
    %c0_5 = arith.constant 0 : index
    %c0_6 = arith.constant 0 : index
    %6 = vector.load %arg7[%c0_5, %c0_6] : memref<8x128xf32, #tpu.memory_space<vmem>>, vector<8x128xf32>
    %7 = vector.shape_cast %5 : vector<8x16xf32> to vector<8x16x1xf32>
    %8 = vector.broadcast %7 : vector<8x16x1xf32> to vector<8x16x128xf32>
    %9 = arith.mulf %4, %8 : vector<8x16x128xf32>
    %cst = arith.constant dense<0.000000e+00> : vector<8x128xf32>
    %10 = vector.multi_reduction <add>, %9, %cst [1] : vector<8x16x128xf32> to vector<8x128xf32>
    %11 = arith.addf %6, %10 : vector<8x128xf32>
    %c0_7 = arith.constant 0 : index
    %c0_8 = arith.constant 0 : index
    %12 = vector.load %arg7[%c0_7, %c0_8] : memref<8x128xf32, #tpu.memory_space<vmem>>, vector<8x128xf32>
    tpu.vector_store %arg7[%c0_7, %c0_8], %11 {strides = array<i32>} : memref<8x128xf32, #tpu.memory_space<vmem>>, vector<8x128xf32>,
    %c0_9 = arith.constant 0 : index
    %c0_10 = arith.constant 0 : index
    %13 = vector.load %arg8[%c0_9, %c0_10] : memref<8x1xf32, #tpu.memory_space<vmem>>, vector<8x1xf32>
    %cst_11 = arith.constant dense<0.000000e+00> : vector<8xf32>
    %14 = vector.multi_reduction <add>, %5, %cst_11 [1] : vector<8x16xf32> to vector<8xf32>
    %15 = vector.shape_cast %14 : vector<8xf32> to vector<8x1xf32>
    %16 = arith.addf %13, %15 : vector<8x1xf32>
    %c0_12 = arith.constant 0 : index
    %c0_13 = arith.constant 0 : index
    %17 = vector.load %arg8[%c0_12, %c0_13] : memref<8x1xf32, #tpu.memory_space<vmem>>, vector<8x1xf32>
    tpu.vector_store %arg8[%c0_12, %c0_13], %16 {strides = array<i32>} : memref<8x1xf32, #tpu.memory_space<vmem>>, vector<8x1xf32>,
    %c0_i32_14 = arith.constant 0 : i32
    %18 = arith.cmpi eq, %arg1, %c0_i32_14 : i32
    %19 = arith.extui %18 : i1 to i32
    %c0_i32_15 = arith.constant 0 : i32
    %20 = arith.cmpi ne, %19, %c0_i32_15 : i32
    scf.if %20 {
      %c0_16 = arith.constant 0 : index
      %c0_17 = arith.constant 0 : index
      %21 = vector.load %arg7[%c0_16, %c0_17] : memref<8x128xf32, #tpu.memory_space<vmem>>, vector<8x128xf32>
      %c0_18 = arith.constant 0 : index
      %c0_19 = arith.constant 0 : index
      %22 = vector.load %arg8[%c0_18, %c0_19] : memref<8x1xf32, #tpu.memory_space<vmem>>, vector<8x1xf32>
      %cst_20 = arith.constant 1.000000e+00 : f32
      %23 = vector.broadcast %cst_20 : f32 to vector<8x1xf32>
      %24 = arith.maximumf %22, %23 : vector<8x1xf32>
      %25 = vector.broadcast %24 : vector<8x1xf32> to vector<8x128xf32>
      %26 = arith.divf %21, %25 : vector<8x128xf32>
      %c0_21 = arith.constant 0 : index
      %c0_22 = arith.constant 0 : index
      %27 = vector.load %arg4[%c0_21, %c0_22] : memref<128x256xf32, #tpu.memory_space<vmem>>, vector<128x256xf32>
      %cst_23 = arith.constant dense<0.000000e+00> : vector<8x256xf32>
      %28 = tpu.matmul %26, %27, %cst_23 {dimension_numbers = #tpu.dot_dimension_numbers<[1], [0], [0], [1], [0, 0, 1, 1], [], []>} : vector<8x128xf32>, vector<128x256xf32>, vector<8x256xf32> -> vector<8x256xf32>
      %c0_24 = arith.constant 0 : index
      %c0_25 = arith.constant 0 : index
      %29 = vector.load %arg5[%c0_24, %c0_25] : memref<1x256xf32, #tpu.memory_space<vmem>>, vector<1x256xf32>
      %30 = vector.broadcast %29 : vector<1x256xf32> to vector<8x256xf32>
      %31 = arith.addf %28, %30 : vector<8x256xf32>
      %32 = vector.extract_strided_slice %31 {offsets = [0, 0], sizes = [8, 128], strides = [1, 1]} : vector<8x256xf32> to vector<8x128xf32>
      %cst_26 = arith.constant dense<0xFF800000> : vector<8xf32>
      %33 = vector.multi_reduction <maximumf>, %32, %cst_26 [1] : vector<8x128xf32> to vector<8xf32>
      %34 = vector.shape_cast %33 : vector<8xf32> to vector<8x1xf32>
      %35 = vector.broadcast %34 : vector<8x1xf32> to vector<8x128xf32>
      %36 = arith.subf %32, %35 : vector<8x128xf32>
      %37 = math.exp %36 : vector<8x128xf32>
      %cst_27 = arith.constant dense<0.000000e+00> : vector<8xf32>
      %38 = vector.multi_reduction <add>, %37, %cst_27 [1] : vector<8x128xf32> to vector<8xf32>
      %39 = vector.shape_cast %38 : vector<8xf32> to vector<8x1xf32>
      %40 = math.log %39 : vector<8x1xf32>
      %41 = vector.broadcast %40 : vector<8x1xf32> to vector<8x128xf32>
      %42 = arith.subf %36, %41 : vector<8x128xf32>
      %c0_28 = arith.constant 0 : index
      %c0_29 = arith.constant 0 : index
      %43 = vector.load %arg6[%c0_28, %c0_29] : memref<8x256xf32, #tpu.memory_space<vmem>>, vector<8x128xf32>
      tpu.vector_store %arg6[%c0_28, %c0_29], %42 {strides = array<i32>} : memref<8x256xf32, #tpu.memory_space<vmem>>, vector<8x128xf32>,
      %44 = vector.extract_strided_slice %31 {offsets = [0, 128], sizes = [8, 128], strides = [1, 1]} : vector<8x256xf32> to vector<8x128xf32>
      %cst_30 = arith.constant dense<0xFF800000> : vector<8xf32>
      %45 = vector.multi_reduction <maximumf>, %44, %cst_30 [1] : vector<8x128xf32> to vector<8xf32>
      %46 = vector.shape_cast %45 : vector<8xf32> to vector<8x1xf32>
      %47 = vector.broadcast %46 : vector<8x1xf32> to vector<8x128xf32>
      %48 = arith.subf %44, %47 : vector<8x128xf32>
      %49 = math.exp %48 : vector<8x128xf32>
      %cst_31 = arith.constant dense<0.000000e+00> : vector<8xf32>
      %50 = vector.multi_reduction <add>, %49, %cst_31 [1] : vector<8x128xf32> to vector<8xf32>
      %51 = vector.shape_cast %50 : vector<8xf32> to vector<8x1xf32>
      %52 = math.log %51 : vector<8x1xf32>
      %53 = vector.broadcast %52 : vector<8x1xf32> to vector<8x128xf32>
      %54 = arith.subf %48, %53 : vector<8x128xf32>
      %c0_32 = arith.constant 0 : index
      %c128 = arith.constant 128 : index
      %55 = vector.load %arg6[%c0_32, %c128] : memref<8x256xf32, #tpu.memory_space<vmem>>, vector<8x128xf32>
      tpu.vector_store %arg6[%c0_32, %c128], %54 {strides = array<i32>} : memref<8x256xf32, #tpu.memory_space<vmem>>, vector<8x128xf32>,
    } else {
    }
    return
  }
  func.func @transform_0(%arg0: i32, %arg1: i32) -> (i32, i32, i32) {
    %c0_i32 = arith.constant 0 : i32
    %c0_i32_0 = arith.constant 0 : i32
    return %arg0, %arg1, %c0_i32 : i32, i32, i32
  }
  func.func @transform_1(%arg0: i32, %arg1: i32) -> (i32, i32) {
    %c0_i32 = arith.constant 0 : i32
    return %arg0, %arg1 : i32, i32
  }
  func.func @transform_2(%arg0: i32, %arg1: i32) -> (i32, i32) {
    %c0_i32 = arith.constant 0 : i32
    %c0_i32_0 = arith.constant 0 : i32
    %c0_i32_1 = arith.constant 0 : i32
    return %c0_i32, %c0_i32_0 : i32, i32
  }
  func.func @transform_3(%arg0: i32, %arg1: i32) -> (i32, i32) {
    %c0_i32 = arith.constant 0 : i32
    %c0_i32_0 = arith.constant 0 : i32
    %c0_i32_1 = arith.constant 0 : i32
    return %c0_i32, %c0_i32_0 : i32, i32
  }
  func.func @transform_4(%arg0: i32, %arg1: i32) -> (i32, i32) {
    %c0_i32 = arith.constant 0 : i32
    %c0_i32_0 = arith.constant 0 : i32
    return %arg0, %c0_i32 : i32, i32
  }
}

module attributes {stable_mosaic.version = 11 : i64} {
  func.func @_fused_heads_kernel(%arg0: i32, %arg1: i32, %arg2: memref<8x16x128xbf16, #tpu.memory_space<vmem>>, %arg3: memref<8x16xf32, #tpu.memory_space<vmem>>, %arg4: memref<128x256xf32, #tpu.memory_space<vmem>>, %arg5: memref<1x256xf32, #tpu.memory_space<vmem>>, %arg6: memref<8x256xf32, #tpu.memory_space<vmem>>, %arg7: memref<8x128xf32, #tpu.memory_space<vmem>>, %arg8: memref<8x1xf32, #tpu.memory_space<vmem>>) attributes {dimension_semantics = [#tpu.dimension_semantics<parallel>, #tpu.dimension_semantics<arbitrary>], iteration_bounds = array<i64: 2, 1>, scalar_prefetch = 0 : i64, scratch_operands = 2 : i64, tpu.core_type = #tpu.core_type<tc>, window_params = [{transform_indices = @transform_0, window_bounds = array<i64: 8, 16, 128>}, {transform_indices = @transform_1, window_bounds = array<i64: 8, 16>}, {pipeline_mode = #tpu.pipeline_mode<synchronous>, transform_indices = @transform_2, window_bounds = array<i64: 128, 256>}, {pipeline_mode = #tpu.pipeline_mode<synchronous>, transform_indices = @transform_3, window_bounds = array<i64: 1, 256>}, {transform_indices = @transform_4, window_bounds = array<i64: 8, 256>}]} {
    %c0_i32 = arith.constant 0 : i32
    %0 = arith.cmpi eq, %arg1, %c0_i32 : i32
    %1 = arith.extui %0 : i1 to i32
    %c0_i32_0 = arith.constant 0 : i32
    %2 = arith.cmpi ne, %1, %c0_i32_0 : i32
    scf.if %2 {
      %cst_16 = arith.constant 0.000000e+00 : f32
      %21 = vector.broadcast %cst_16 : f32 to vector<8x128xf32>
      %c0_17 = arith.constant 0 : index
      %c0_18 = arith.constant 0 : index
      %22 = vector.load %arg7[%c0_17, %c0_18] : memref<8x128xf32, #tpu.memory_space<vmem>>, vector<8x128xf32>
      tpu.vector_store %arg7[%c0_17, %c0_18], %21 {strides = array<i32>} : memref<8x128xf32, #tpu.memory_space<vmem>>, vector<8x128xf32>,
      %cst_19 = arith.constant 0.000000e+00 : f32
      %23 = vector.broadcast %cst_19 : f32 to vector<8x1xf32>
      %c0_20 = arith.constant 0 : index
      %c0_21 = arith.constant 0 : index
      %24 = vector.load %arg8[%c0_20, %c0_21] : memref<8x1xf32, #tpu.memory_space<vmem>>, vector<8x1xf32>
      tpu.vector_store %arg8[%c0_20, %c0_21], %23 {strides = array<i32>} : memref<8x1xf32, #tpu.memory_space<vmem>>, vector<8x1xf32>,
    } else {
    }
    %c0 = arith.constant 0 : index
    %c0_1 = arith.constant 0 : index
    %c0_2 = arith.constant 0 : index
    %3 = vector.load %arg2[%c0, %c0_1, %c0_2] : memref<8x16x128xbf16, #tpu.memory_space<vmem>>, vector<8x16x128xbf16>
    %4 = arith.extf %3 : vector<8x16x128xbf16> to vector<8x16x128xf32>
    %c0_3 = arith.constant 0 : index
    %c0_4 = arith.constant 0 : index
    %5 = vector.load %arg3[%c0_3, %c0_4] : memref<8x16xf32, #tpu.memory_space<vmem>>, vector<8x16xf32>
    %c0_5 = arith.constant 0 : index
    %c0_6 = arith.constant 0 : index
    %6 = vector.load %arg7[%c0_5, %c0_6] : memref<8x128xf32, #tpu.memory_space<vmem>>, vector<8x128xf32>
    %7 = vector.shape_cast %5 : vector<8x16xf32> to vector<8x16x1xf32>
    %8 = vector.broadcast %7 : vector<8x16x1xf32> to vector<8x16x128xf32>
    %9 = arith.mulf %4, %8 : vector<8x16x128xf32>
    %cst = arith.constant dense<0.000000e+00> : vector<8x128xf32>
    %10 = vector.multi_reduction <add>, %9, %cst [1] : vector<8x16x128xf32> to vector<8x128xf32>
    %11 = arith.addf %6, %10 : vector<8x128xf32>
    %c0_7 = arith.constant 0 : index
    %c0_8 = arith.constant 0 : index
    %12 = vector.load %arg7[%c0_7, %c0_8] : memref<8x128xf32, #tpu.memory_space<vmem>>, vector<8x128xf32>
    tpu.vector_store %arg7[%c0_7, %c0_8], %11 {strides = array<i32>} : memref<8x128xf32, #tpu.memory_space<vmem>>, vector<8x128xf32>,
    %c0_9 = arith.constant 0 : index
    %c0_10 = arith.constant 0 : index
    %13 = vector.load %arg8[%c0_9, %c0_10] : memref<8x1xf32, #tpu.memory_space<vmem>>, vector<8x1xf32>
    %cst_11 = arith.constant dense<0.000000e+00> : vector<8xf32>
    %14 = vector.multi_reduction <add>, %5, %cst_11 [1] : vector<8x16xf32> to vector<8xf32>
    %15 = vector.shape_cast %14 : vector<8xf32> to vector<8x1xf32>
    %16 = arith.addf %13, %15 : vector<8x1xf32>
    %c0_12 = arith.constant 0 : index
    %c0_13 = arith.constant 0 : index
    %17 = vector.load %arg8[%c0_12, %c0_13] : memref<8x1xf32, #tpu.memory_space<vmem>>, vector<8x1xf32>
    tpu.vector_store %arg8[%c0_12, %c0_13], %16 {strides = array<i32>} : memref<8x1xf32, #tpu.memory_space<vmem>>, vector<8x1xf32>,
    %c0_i32_14 = arith.constant 0 : i32
    %18 = arith.cmpi eq, %arg1, %c0_i32_14 : i32
    %19 = arith.extui %18 : i1 to i32
    %c0_i32_15 = arith.constant 0 : i32
    %20 = arith.cmpi ne, %19, %c0_i32_15 : i32
    scf.if %20 {
      %c0_16 = arith.constant 0 : index
      %c0_17 = arith.constant 0 : index
      %21 = vector.load %arg7[%c0_16, %c0_17] : memref<8x128xf32, #tpu.memory_space<vmem>>, vector<8x128xf32>
      %c0_18 = arith.constant 0 : index
      %c0_19 = arith.constant 0 : index
      %22 = vector.load %arg8[%c0_18, %c0_19] : memref<8x1xf32, #tpu.memory_space<vmem>>, vector<8x1xf32>
      %cst_20 = arith.constant 1.000000e+00 : f32
      %23 = vector.broadcast %cst_20 : f32 to vector<8x1xf32>
      %24 = arith.maximumf %22, %23 : vector<8x1xf32>
      %25 = vector.broadcast %24 : vector<8x1xf32> to vector<8x128xf32>
      %26 = arith.divf %21, %25 : vector<8x128xf32>
      %c0_21 = arith.constant 0 : index
      %c0_22 = arith.constant 0 : index
      %27 = vector.load %arg4[%c0_21, %c0_22] : memref<128x256xf32, #tpu.memory_space<vmem>>, vector<128x256xf32>
      %cst_23 = arith.constant dense<0.000000e+00> : vector<8x256xf32>
      %28 = tpu.matmul %26, %27, %cst_23 {dimension_numbers = #tpu.dot_dimension_numbers<[1], [0], [0], [1], [0, 0, 1, 1], [], []>} : vector<8x128xf32>, vector<128x256xf32>, vector<8x256xf32> -> vector<8x256xf32>
      %c0_24 = arith.constant 0 : index
      %c0_25 = arith.constant 0 : index
      %29 = vector.load %arg5[%c0_24, %c0_25] : memref<1x256xf32, #tpu.memory_space<vmem>>, vector<1x256xf32>
      %30 = vector.broadcast %29 : vector<1x256xf32> to vector<8x256xf32>
      %31 = arith.addf %28, %30 : vector<8x256xf32>
      %32 = vector.extract_strided_slice %31 {offsets = [0, 0], sizes = [8, 128], strides = [1, 1]} : vector<8x256xf32> to vector<8x128xf32>
      %cst_26 = arith.constant dense<0xFF800000> : vector<8xf32>
      %33 = vector.multi_reduction <maximumf>, %32, %cst_26 [1] : vector<8x128xf32> to vector<8xf32>
      %34 = vector.shape_cast %33 : vector<8xf32> to vector<8x1xf32>
      %35 = vector.broadcast %34 : vector<8x1xf32> to vector<8x128xf32>
      %36 = arith.subf %32, %35 : vector<8x128xf32>
      %37 = math.exp %36 : vector<8x128xf32>
      %cst_27 = arith.constant dense<0.000000e+00> : vector<8xf32>
      %38 = vector.multi_reduction <add>, %37, %cst_27 [1] : vector<8x128xf32> to vector<8xf32>
      %39 = vector.shape_cast %38 : vector<8xf32> to vector<8x1xf32>
      %40 = math.log %39 : vector<8x1xf32>
      %41 = vector.broadcast %40 : vector<8x1xf32> to vector<8x128xf32>
      %42 = arith.subf %36, %41 : vector<8x128xf32>
      %c0_28 = arith.constant 0 : index
      %c0_29 = arith.constant 0 : index
      %43 = vector.load %arg6[%c0_28, %c0_29] : memref<8x256xf32, #tpu.memory_space<vmem>>, vector<8x128xf32>
      tpu.vector_store %arg6[%c0_28, %c0_29], %42 {strides = array<i32>} : memref<8x256xf32, #tpu.memory_space<vmem>>, vector<8x128xf32>,
      %44 = vector.extract_strided_slice %31 {offsets = [0, 128], sizes = [8, 128], strides = [1, 1]} : vector<8x256xf32> to vector<8x128xf32>
      %cst_30 = arith.constant dense<0xFF800000> : vector<8xf32>
      %45 = vector.multi_reduction <maximumf>, %44, %cst_30 [1] : vector<8x128xf32> to vector<8xf32>
      %46 = vector.shape_cast %45 : vector<8xf32> to vector<8x1xf32>
      %47 = vector.broadcast %46 : vector<8x1xf32> to vector<8x128xf32>
      %48 = arith.subf %44, %47 : vector<8x128xf32>
      %49 = math.exp %48 : vector<8x128xf32>
      %cst_31 = arith.constant dense<0.000000e+00> : vector<8xf32>
      %50 = vector.multi_reduction <add>, %49, %cst_31 [1] : vector<8x128xf32> to vector<8xf32>
      %51 = vector.shape_cast %50 : vector<8xf32> to vector<8x1xf32>
      %52 = math.log %51 : vector<8x1xf32>
      %53 = vector.broadcast %52 : vector<8x1xf32> to vector<8x128xf32>
      %54 = arith.subf %48, %53 : vector<8x128xf32>
      %c0_32 = arith.constant 0 : index
      %c128 = arith.constant 128 : index
      %55 = vector.load %arg6[%c0_32, %c128] : memref<8x256xf32, #tpu.memory_space<vmem>>, vector<8x128xf32>
      tpu.vector_store %arg6[%c0_32, %c128], %54 {strides = array<i32>} : memref<8x256xf32, #tpu.memory_space<vmem>>, vector<8x128xf32>,
    } else {
    }
    return
  }
  func.func @transform_0(%arg0: i32, %arg1: i32) -> (i32, i32, i32) {
    %c0_i32 = arith.constant 0 : i32
    %c0_i32_0 = arith.constant 0 : i32
    return %arg0, %arg1, %c0_i32 : i32, i32, i32
  }
  func.func @transform_1(%arg0: i32, %arg1: i32) -> (i32, i32) {
    %c0_i32 = arith.constant 0 : i32
    return %arg0, %arg1 : i32, i32
  }
  func.func @transform_2(%arg0: i32, %arg1: i32) -> (i32, i32) {
    %c0_i32 = arith.constant 0 : i32
    %c0_i32_0 = arith.constant 0 : i32
    %c0_i32_1 = arith.constant 0 : i32
    return %c0_i32, %c0_i32_0 : i32, i32
  }
  func.func @transform_3(%arg0: i32, %arg1: i32) -> (i32, i32) {
    %c0_i32 = arith.constant 0 : i32
    %c0_i32_0 = arith.constant 0 : i32
    %c0_i32_1 = arith.constant 0 : i32
    return %c0_i32, %c0_i32_0 : i32, i32
  }
  func.func @transform_4(%arg0: i32, %arg1: i32) -> (i32, i32) {
    %c0_i32 = arith.constant 0 : i32
    %c0_i32_0 = arith.constant 0 : i32
    return %arg0, %c0_i32 : i32, i32
  }
}

</mosaic_0001>

<llo_original>
// kernel: tpu_custom_call.1
$region0: #{tpu_custom_call.1}
  #allocation0 [shape = 'u32[]', space=smem, size = 0x4, offset = 0x4, fixed_abs, tag = 'smem constant byte address 0x4 - core index']
  #allocation1 [shape = 'u32[144,128]{1,0:T(1,128)}', space=vmem, size = 0x12000, scoped, tag = 'internal scratch']
  #allocation2 [shape = 'f32[8,128]{1,0:T(8,128)}', space=vmem, size = 0x1000, scoped, tag = 'scratch operand']
  #allocation3 [shape = 'f32[8,1]{1,0:T(8,128)}', space=vmem, size = 0x1000, scoped, tag = 'scratch operand']
  %s0 = inlined_call_operand.hbm [shape: bf16[12,16,128], index: 0, kind: input, shape index: {}]
  %s1 = inlined_call_operand.hbm [shape: f32[12,16], index: 1, kind: input, shape index: {}]
  %s2 = inlined_call_operand.hbm [shape: f32[128,256], index: 2, kind: input, shape index: {}]
  %s3 = inlined_call_operand.vmem [shape: f32[1,256], index: 3, kind: input, shape index: {}]
  %s4 = inlined_call_operand.hbm [shape: f32[12,256], index: 4, kind: output, shape index: {}]
  %s5 = sld [smem:[#allocation0]]
  $region69: #{tpu_custom_call.1} parent=0
    _
  %s7 = ssub.s32 1, %s5
  %s8 = scalar_select 0, %s7, %s5
  $region1: #{tpu_custom_call.1} parent=0
    #allocation4 [shape = 'u8[65536]{0}', space=vmem, size = 0x10000, scoped, tag = 'input window, operand 0']
    #allocation5 [shape = 's32[2]{0}', space=sflag, size = 0x8, scoped, tag = 'scoped memory for tpu_custom_call.1']
    #allocation6 [shape = 's32[2]{0}', space=sflag, size = 0x8, scoped, tag = 'scoped memory for tpu_custom_call.1']
    #allocation7 [shape = 'u8[8192]{0}', space=vmem, size = 0x2000, scoped, tag = 'input window, operand 1']
    #allocation8 [shape = 's32[2]{0}', space=sflag, size = 0x8, scoped, tag = 'scoped memory for tpu_custom_call.1']
    #allocation9 [shape = 'u8[131072]{0}', space=vmem, size = 0x20000, scoped, tag = 'input window, operand 2, single buffered']
    #allocation10 [shape = 'u8[16384]{0}', space=vmem, size = 0x4000, scoped, tag = 'output window, operand 0']
    %9 = vsyncpa [#allocation5], 0
    %s10 = scalar_lea.sflag [#allocation5], 1
    %11 = vsyncpa %s10, 0
    %12 = vsyncpa [#allocation8], 0
    %s13 = scalar_lea.sflag [#allocation8], 1
    %14 = vsyncpa %s13, 0
    %15 = vsyncpa [#allocation6], 0
    %s16 = scalar_lea.sflag [#allocation6], 1
    %17 = vsyncpa %s16, 0
    loop: start=0, step=1, limit=4
    $region2: #{tpu_custom_call.1} parent=1 // loop_pre_header
      _
    $region3: #{tpu_custom_call.1} parent=1 // loop_header
      %s19 = sphi 0, %s23
      %p20 = scmp.ge.s32.totalorder %s19, 4
      %s26 = sphi 0, %s38
      %s27 = sphi 0, %s34
      %s28 = sphi 0, %s26
      %s29 = sphi 0, %s27
      %s30 = sphi 0, %s28
      %s31 = sphi 0, %s29
      %s43 = sphi 0, %s45
      %s46 = sphi 0, %s43
      %s47 = sphi 0, %s46
      %s63 = sphi 0, %s47
      %s71 = sphi 0, %s73
      %s74 = sphi 0, %s71
      %s75 = sphi 0, %s74
      %s91 = sphi 0, %s75
      %s95 = sphi 0, %s95
      %s97 = sphi 0, %s95
      %s98 = sphi 0, %s97
      %s112 = sphi 0, %s98
      %s116 = sphi 0, %s116
      %s118 = sphi 0, %s116
      %s119 = sphi 0, %s118
      %s133 = sphi 0, %s119
      %s139 = sphi 0, %s141
      %s142 = sphi 0, %s139
      %s143 = sphi 0, %s142
      %s159 = sphi 0, %s143
    $region4: #{tpu_custom_call.1} parent=1 // loop_header_branch
      %22 = sbr.rel (%p20) target = $region8
    $region5: #{tpu_custom_call.1} parent=1 // loop_body
      %s24 = ssub.s32 %s19, 1
      %s25 = ssub.s32 %s19, 2
      %s32 = sadd.s32 1, %s27
      %p33 = scmp.ge.s32.totalorder %s32, 1
      %s34 = scalar_select %p33, 0, %s32
      %s35 = sadd.s32 1, %s26
      %s36 = scalar_select %p33, %s35, %s26
      %p37 = scmp.ge.s32.totalorder %s36, 2
      %s38 = scalar_select %p37, 0, %s36
      %s39 = ssub.s32 %s26, %s38
      %s40 = ssub.s32 %s27, %s34
      %s41 = sor.u32 %s39, %s40
      %p42 = scmp.eq.s32.totalorder %s41, 0
      %s44 = sadd.s32 %s43, 1
      %s45 = scalar_select %p42, %s43, %s44
      %p48 = pneg %p42
      %p49 = scmp.eq.s32.totalorder %s19, 1
      %p50 = por %p48, %p49
      %p51 = scmp.ne.s32.totalorder %s43, %s46
      %p52 = scmp.eq.s32.totalorder %s19, 0
      %p53 = por %p51, %p52
      %p54 = scmp.ne.s32.totalorder %s43, %s46
      %p55 = scmp.eq.s32.totalorder %s24, 1
      %p56 = por %p54, %p55
      %p57 = scmp.ne.s32.totalorder %s46, %s47
      %p58 = scmp.eq.s32.totalorder %s24, 0
      %p59 = por %p57, %p58
      %p60 = scmp.ne.s32.totalorder %s46, %s47
      %p61 = scmp.eq.s32.totalorder %s25, 1
      %p62 = por %p60, %p61
      %p64 = scmp.ne.s32.totalorder %s47, %s63
      %p65 = scmp.eq.s32.totalorder %s25, 0
      %p66 = por %p64, %p65
      %s67 = ssub.s32 %s26, %s38
      %s68 = ssub.s32 %s27, %s34
      %s69 = sor.u32 %s67, %s68
      %p70 = scmp.eq.s32.totalorder %s69, 0
      %s72 = sadd.s32 %s71, 1
      %s73 = scalar_select %p70, %s71, %s72
      %p76 = pneg %p70
      %p77 = scmp.eq.s32.totalorder %s19, 1
      %p78 = por %p76, %p77
      %p79 = scmp.ne.s32.totalorder %s71, %s74
      %p80 = scmp.eq.s32.totalorder %s19, 0
      %p81 = por %p79, %p80
      %p82 = scmp.ne.s32.totalorder %s71, %s74
      %p83 = scmp.eq.s32.totalorder %s24, 1
      %p84 = por %p82, %p83
      %p85 = scmp.ne.s32.totalorder %s74, %s75
      %p86 = scmp.eq.s32.totalorder %s24, 0
      %p87 = por %p85, %p86
      %p88 = scmp.ne.s32.totalorder %s74, %s75
      %p89 = scmp.eq.s32.totalorder %s25, 1
      %p90 = por %p88, %p89
      %p92 = scmp.ne.s32.totalorder %s75, %s91
      %p93 = scmp.eq.s32.totalorder %s25, 0
      %p94 = por %p92, %p93
      %s96 = sadd.s32 %s95, 1
      %p99 = scmp.eq.s32.totalorder %s19, 1
      %p100 = scmp.ne.s32.totalorder %s95, %s97
      %p101 = scmp.eq.s32.totalorder %s19, 0
      %p102 = por %p100, %p101
      %p103 = scmp.ne.s32.totalorder %s95, %s97
      %p104 = scmp.eq.s32.totalorder %s24, 1
      %p105 = por %p103, %p104
      %p106 = scmp.ne.s32.totalorder %s97, %s98
      %p107 = scmp.eq.s32.totalorder %s24, 0
      %p108 = por %p106, %p107
      %p109 = scmp.ne.s32.totalorder %s97, %s98
      %p110 = scmp.eq.s32.totalorder %s25, 1
      %p111 = por %p109, %p110
      %p113 = scmp.ne.s32.totalorder %s98, %s112
      %p114 = scmp.eq.s32.totalorder %s25, 0
      %p115 = por %p113, %p114
      %s117 = sadd.s32 %s116, 1
      %p120 = scmp.eq.s32.totalorder %s19, 1
      %p121 = scmp.ne.s32.totalorder %s116, %s118
      %p122 = scmp.eq.s32.totalorder %s19, 0
      %p123 = por %p121, %p122
      %p124 = scmp.ne.s32.totalorder %s116, %s118
      %p125 = scmp.eq.s32.totalorder %s24, 1
      %p126 = por %p124, %p125
      %p127 = scmp.ne.s32.totalorder %s118, %s119
      %p128 = scmp.eq.s32.totalorder %s24, 0
      %p129 = por %p127, %p128
      %p130 = scmp.ne.s32.totalorder %s118, %s119
      %p131 = scmp.eq.s32.totalorder %s25, 1
      %p132 = por %p130, %p131
      %p134 = scmp.ne.s32.totalorder %s119, %s133
      %p135 = scmp.eq.s32.totalorder %s25, 0
      %p136 = por %p134, %p135
      %s137 = ssub.s32 %s26, %s38
      %p138 = scmp.eq.s32.totalorder %s137, 0
      %s140 = sadd.s32 %s139, 1
      %s141 = scalar_select %p138, %s139, %s140
      %p144 = pneg %p138
      %p145 = scmp.eq.s32.totalorder %s19, 1
      %p146 = por %p144, %p145
      %p147 = scmp.ne.s32.totalorder %s139, %s142
      %p148 = scmp.eq.s32.totalorder %s19, 0
      %p149 = por %p147, %p148
      %p150 = scmp.ne.s32.totalorder %s139, %s142
      %p151 = scmp.eq.s32.totalorder %s24, 1
      %p152 = por %p150, %p151
      %p153 = scmp.ne.s32.totalorder %s142, %s143
      %p154 = scmp.eq.s32.totalorder %s24, 0
      %p155 = por %p153, %p154
      %p156 = scmp.ne.s32.totalorder %s142, %s143
      %p157 = scmp.eq.s32.totalorder %s25, 1
      %p158 = por %p156, %p157
      %p160 = scmp.ne.s32.totalorder %s143, %s159
      %p161 = scmp.eq.s32.totalorder %s25, 0
      %p162 = por %p160, %p161
      %p163 = scmp.le.s32.totalorder 1, %s19
      %p164 = scmp.lt.s32.totalorder %s19, 3
      %p165 = pnand %p163, %p164
      %p166 = pneg %p165
      // Predicated region
      $region9: #{tpu_custom_call.1} parent=5 // pred_check
        _
      $region10: #{tpu_custom_call.1} parent=5 // pred_check_branch
        %168 = sbr.rel (%p165) target = $region12
      $region11: #{tpu_custom_call.1} parent=5 // pred_region
        %s169 = ssub.s32 %s19, 1
        // Predicated region
        $region13: #{tpu_custom_call.1} parent=11 // pred_check
          %p170 = pneg %p108
        $region14: #{tpu_custom_call.1} parent=11 // pred_check_branch
          %172 = sbr.rel (%p170) target = $region16
        $region15: #{tpu_custom_call.1} parent=11 // pred_region
          %s174 = ssub.s32 4096, 4096
          %175 = vsyncadd [#allocation8], %s174
          %s176 = sshll.u32 [#allocation9], 4
          %s177 = int_to_ptr.vmem [resolvable:$true] %s176
          %182 = dma.hbm_to_vmem [thread:$0]  %s2, 4096, %s177, [#allocation8], 256, 256, 16
        $region16: #{tpu_custom_call.1} parent=11 // pred_fallthru
          _
        // Predicated region
        $region17: #{tpu_custom_call.1} parent=11 // pred_check
          %p183 = pneg %p129
        $region18: #{tpu_custom_call.1} parent=11 // pred_check_branch
          %185 = sbr.rel (%p183) target = $region20
        $region19: #{tpu_custom_call.1} parent=11 // pred_region
          _
        $region20: #{tpu_custom_call.1} parent=11 // pred_fallthru
          _
      $region12: #{tpu_custom_call.1} parent=5 // pred_fallthru
        _
      %p186 = scmp.lt.s32.totalorder %s19, 2
      // Predicated region
      $region21: #{tpu_custom_call.1} parent=5 // pred_check
        %p187 = pneg %p186
      $region22: #{tpu_custom_call.1} parent=5 // pred_check_branch
        %189 = sbr.rel (%p187) target = $region24
      $region23: #{tpu_custom_call.1} parent=5 // pred_region
        // Predicated region
        $region25: #{tpu_custom_call.1} parent=23 // pred_check
          %p190 = pneg %p53
        $region26: #{tpu_custom_call.1} parent=23 // pred_check_branch
          %192 = sbr.rel (%p190) target = $region28
        $region27: #{tpu_custom_call.1} parent=23 // pred_region
          %s193 = sand.u32 %s43, 1
          %s194 = scalar_lea.sflag [#allocation5], %s193
          %s195 = sand.u32 %s43, 1
          %s196 = smul.addr %s195, 64
          %s197 = scalar_lea.vmem [#allocation4], %s196
          %s198 = smul.u32 8, %s26
          %s199 = smul.u32 2, %s27
          %s200 = ssub.s32 12, %s198
          %p201 = scmp.lt.s32.totalorder %s200, 8
          %s202 = scalar_select %p201, %s200, 8
          %s203 = smul.u32 64, %s202
          %s204 = smul.u32 %s203, 2
          %s206 = ssub.s32 1024, %s204
          %207 = vsyncadd %s194, %s206
          %p208 = scmp.ne.s32.totalorder 0, %s204
          %s209 = smul.addr %s198, 2
          %s210 = sadd.s32 %s199, %s209
          %s211 = smul.addr %s210, 64
          %s212 = scalar_lea.hbm %s0, %s211
          %s213 = smul.u32 %s202, 2
          %s214 = smul.u32 4, %s213
          %s215 = sshll.u32 %s197, 4
          %s216 = int_to_ptr.vmem [resolvable:$true] %s215
          %s217 = sshll.u32 %s214, 4
          %221 = dma.hbm_to_vmem [thread:$0]  (%p208), %s212, %s217, %s216, %s194, 64, 64, 4
        $region28: #{tpu_custom_call.1} parent=23 // pred_fallthru
          _
        // Predicated region
        $region29: #{tpu_custom_call.1} parent=23 // pred_check
          %p222 = pneg %p81
        $region30: #{tpu_custom_call.1} parent=23 // pred_check_branch
          %224 = sbr.rel (%p222) target = $region32
        $region31: #{tpu_custom_call.1} parent=23 // pred_region
          %s225 = sand.u32 %s19, 1
          %s226 = scalar_lea.sflag [#allocation8], %s225
          %s227 = sand.u32 %s71, 1
          %s228 = smul.addr %s227, 8
          %s229 = scalar_lea.vmem [#allocation7], %s228
          %s231 = ssub.s32 128, 128
          %232 = vsyncadd %s226, %s231
          %s233 = sadd.s32 %s27, %s26
          %s234 = smul.addr %s233, 128
          %s235 = scalar_lea.hbm %s1, %s234
          %s237 = sshll.u32 %s229, 4
          %s238 = int_to_ptr.vmem [resolvable:$true] %s237
          %240 = dma.hbm_to_vmem [thread:$0]  %s235, 128, %s238, %s226
        $region32: #{tpu_custom_call.1} parent=23 // pred_fallthru
          _
      $region24: #{tpu_custom_call.1} parent=5 // pred_fallthru
        _
      %p241 = scmp.le.s32.totalorder 1, %s19
      %p242 = scmp.lt.s32.totalorder %s19, 3
      %p243 = pnand %p241, %p242
      %p244 = pneg %p243
      // Predicated region
      $region33: #{tpu_custom_call.1} parent=5 // pred_check
        _
      $region34: #{tpu_custom_call.1} parent=5 // pred_check_branch
        %246 = sbr.rel (%p243) target = $region36
      $region35: #{tpu_custom_call.1} parent=5 // pred_region
        %s247 = ssub.s32 %s19, 1
        %s248 = sand.u32 %s46, 1
        %s249 = scalar_lea.sflag [#allocation5], %s248
        %s250 = sand.u32 %s46, 1
        %s251 = smul.addr %s250, 64
        %s252 = scalar_lea.vmem [#allocation4], %s251
        // Predicated region
        $region37: #{tpu_custom_call.1} parent=35 // pred_check
          %p253 = pneg %p59
        $region38: #{tpu_custom_call.1} parent=35 // pred_check_branch
          %255 = sbr.rel (%p253) target = $region40
        $region39: #{tpu_custom_call.1} parent=35 // pred_region
          %256 = dma.done %s249, 1024
        $region40: #{tpu_custom_call.1} parent=35 // pred_fallthru
          _
        %s257 = sand.u32 %s24, 1
        %s258 = scalar_lea.sflag [#allocation8], %s257
        %s259 = sand.u32 %s74, 1
        %s260 = smul.addr %s259, 8
        %s261 = scalar_lea.vmem [#allocation7], %s260
        // Predicated region
        $region41: #{tpu_custom_call.1} parent=35 // pred_check
          %p262 = pneg %p87
        $region42: #{tpu_custom_call.1} parent=35 // pred_check_branch
          %264 = sbr.rel (%p262) target = $region44
        $region43: #{tpu_custom_call.1} parent=35 // pred_region
          %265 = dma.done %s258, 128
        $region44: #{tpu_custom_call.1} parent=35 // pred_fallthru
          _
        // Predicated region
        $region45: #{tpu_custom_call.1} parent=35 // pred_check
          %p266 = pneg %p108
        $region46: #{tpu_custom_call.1} parent=35 // pred_check_branch
          %268 = sbr.rel (%p266) target = $region48
        $region47: #{tpu_custom_call.1} parent=35 // pred_region
          %269 = dma.done [#allocation8], 4096
        $region48: #{tpu_custom_call.1} parent=35 // pred_fallthru
          _
        %s270 = sand.u32 %s46, 1
        %s271 = scalar_lea.sflag [#allocation5], %s270
        %s272 = sand.u32 %s46, 1
        %s273 = smul.addr %s272, 64
        %s274 = scalar_lea.vmem [#allocation4], %s273
        %p275 = pneg %p59
        %p276 = pneg %p56
        %s277 = sand.u32 %s24, 1
        %s278 = scalar_lea.sflag [#allocation8], %s277
        %s279 = sand.u32 %s74, 1
        %s280 = smul.addr %s279, 8
        %s281 = scalar_lea.vmem [#allocation7], %s280
        %p282 = pneg %p87
        %p283 = pneg %p84
        %p284 = pneg %p108
        %p285 = pneg %p105
        %p286 = pneg %p129
        %p287 = pneg %p126
        %p288 = pneg %p155
        %p289 = pneg %p152
        %s290 = sand.u32 %s142, 1
        %s291 = scalar_lea.sflag [#allocation6], %s290
        %s292 = sand.u32 %s142, 1
        %s293 = smul.addr %s292, 16
        %s294 = scalar_lea.vmem [#allocation10], %s293
        %s295 = smul.u32 8, %s28
        %s296 = smul.u32 2, %s29
        %s297 = ssub.s32 12, %s295
        %p298 = scmp.lt.s32.totalorder %s297, 8
        %s299 = scalar_select %p298, %s297, 8
        %s300 = smul.u32 64, %s299
        %s301 = smul.u32 %s300, 2
        %p302 = scmp.eq.s32.totalorder %s29, 0
        // Predicated region
        $region49: #{tpu_custom_call.1} parent=35 // pred_check
          %p303 = pneg %p302
        $region50: #{tpu_custom_call.1} parent=35 // pred_check_branch
          %305 = sbr.rel (%p303) target = $region52
        $region51: #{tpu_custom_call.1} parent=35 // pred_region
          %306 = vst [vmem:[#allocation2] sm:$0xff] 0.0
          %vm307 = vcmask 7168
          %308 = vst.msk [vmem:[#allocation3] sm:$0xff] %vm307, 0.0
        $region52: #{tpu_custom_call.1} parent=35 // pred_fallthru
          _
        %v309 = vld [vmem:[%s252] sm:$0xf]
        %v310 = vld [vmem:[%s252 + $0x4] sm:$0xf]
        %v311 = vld [vmem:[%s252 + $0x8] sm:$0xf]
        %v312 = vld [vmem:[%s252 + $0xc] sm:$0xf]
        %v313 = vld [vmem:[%s252 + $0x10] sm:$0xf]
        %v314 = vld [vmem:[%s252 + $0x14] sm:$0xf]
        %v315 = vld [vmem:[%s252 + $0x18] sm:$0xf]
        %v316 = vld [vmem:[%s252 + $0x1c] sm:$0xf]
        %v317 = vld [vmem:[%s252 + $0x20] sm:$0xf]
        %v318 = vld [vmem:[%s252 + $0x24] sm:$0xf]
        %v319 = vld [vmem:[%s252 + $0x28] sm:$0xf]
        %v320 = vld [vmem:[%s252 + $0x2c] sm:$0xf]
        %v321 = vld [vmem:[%s252 + $0x30] sm:$0xf]
        %v322 = vld [vmem:[%s252 + $0x34] sm:$0xf]
        %v323 = vld [vmem:[%s252 + $0x38] sm:$0xf]
        %v324 = vld [vmem:[%s252 + $0x3c] sm:$0xf]
        %v325 = vunpack.c.l.bf16 %v309
        %v326 = vunpack.c.l.bf16 %v310
        %v327 = vunpack.c.l.bf16 %v311
        %v328 = vunpack.c.l.bf16 %v312
        %v329 = vunpack.c.l.bf16 %v313
        %v330 = vunpack.c.l.bf16 %v314
        %v331 = vunpack.c.l.bf16 %v315
        %v332 = vunpack.c.l.bf16 %v316
        %v333 = vunpack.c.l.bf16 %v317
        %v334 = vunpack.c.l.bf16 %v318
        %v335 = vunpack.c.l.bf16 %v319
        %v336 = vunpack.c.l.bf16 %v320
        %v337 = vunpack.c.l.bf16 %v321
        %v338 = vunpack.c.l.bf16 %v322
        %v339 = vunpack.c.l.bf16 %v323
        %v340 = vunpack.c.l.bf16 %v324
        %v341 = vld [vmem:[%s261] sm:$0xff]
        %v342 = vld [vmem:[#allocation2] sm:$0xff]
        %v343 = vlaneseq
        %v344 = vshrl.u32 %v343, 7
        %v345 = vsub.s32 0, %v344
        %v346 = vrot.slane %v341, %v345
        %348 = vbcast.lane.b32.xlu0 %v346, 256
        %v349 = vpop.permute.xlu0 %348
        %s351 = sor.u32 256, 8
        %352 = vbcast.lane.b32.xlu0 %v346, %s351
        %v353 = vpop.permute.xlu0 %352
        %v354 = vlaneseq
        %v355 = vshrl.u32 %v354, 7
        %v356 = vsub.s32 1, %v355
        %v357 = vrot.slane %v341, %v356
        %359 = vbcast.lane.b32.xlu0 %v357, 256
        %v360 = vpop.permute.xlu0 %359
        %s362 = sor.u32 256, 8
        %363 = vbcast.lane.b32.xlu0 %v357, %s362
        %v364 = vpop.permute.xlu0 %363
        %v365 = vlaneseq
        %v366 = vshrl.u32 %v365, 7
        %v367 = vsub.s32 2, %v366
        %v368 = vrot.slane %v341, %v367
        %370 = vbcast.lane.b32.xlu0 %v368, 256
        %v371 = vpop.permute.xlu0 %370
        %s373 = sor.u32 256, 8
        %374 = vbcast.lane.b32.xlu0 %v368, %s373
        %v375 = vpop.permute.xlu0 %374
        %v376 = vlaneseq
        %v377 = vshrl.u32 %v376, 7
        %v378 = vsub.s32 3, %v377
        %v379 = vrot.slane %v341, %v378
        %381 = vbcast.lane.b32.xlu0 %v379, 256
        %v382 = vpop.permute.xlu0 %381
        %s384 = sor.u32 256, 8
        %385 = vbcast.lane.b32.xlu0 %v379, %s384
        %v386 = vpop.permute.xlu0 %385
        %v387 = vlaneseq
        %v388 = vshrl.u32 %v387, 7
        %v389 = vsub.s32 4, %v388
        %v390 = vrot.slane %v341, %v389
        %392 = vbcast.lane.b32.xlu0 %v390, 256
        %v393 = vpop.permute.xlu0 %392
        %s395 = sor.u32 256, 8
        %396 = vbcast.lane.b32.xlu0 %v390, %s395
        %v397 = vpop.permute.xlu0 %396
        %v398 = vlaneseq
        %v399 = vshrl.u32 %v398, 7
        %v400 = vsub.s32 5, %v399
        %v401 = vrot.slane %v341, %v400
        %403 = vbcast.lane.b32.xlu0 %v401, 256
        %v404 = vpop.permute.xlu0 %403
        %s406 = sor.u32 256, 8
        %407 = vbcast.lane.b32.xlu0 %v401, %s406
        %v408 = vpop.permute.xlu0 %407
        %v409 = vlaneseq
        %v410 = vshrl.u32 %v409, 7
        %v411 = vsub.s32 6, %v410
        %v412 = vrot.slane %v341, %v411
        %414 = vbcast.lane.b32.xlu0 %v412, 256
        %v415 = vpop.permute.xlu0 %414
        %s417 = sor.u32 256, 8
        %418 = vbcast.lane.b32.xlu0 %v412, %s417
        %v419 = vpop.permute.xlu0 %418
        %v420 = vlaneseq
        %v421 = vshrl.u32 %v420, 7
        %v422 = vsub.s32 7, %v421
        %v423 = vrot.slane %v341, %v422
        %425 = vbcast.lane.b32.xlu0 %v423, 256
        %v426 = vpop.permute.xlu0 %425
        %s428 = sor.u32 256, 8
        %429 = vbcast.lane.b32.xlu0 %v423, %s428
        %v430 = vpop.permute.xlu0 %429
        %v431 = vmul.f32 %v325, %v349
        %v432 = vmul.f32 %v326, %v353
        %v433 = vmul.f32 %v327, %v360
        %v434 = vmul.f32 %v328, %v364
        %v435 = vmul.f32 %v329, %v371
        %v436 = vmul.f32 %v330, %v375
        %v437 = vmul.f32 %v331, %v382
        %v438 = vmul.f32 %v332, %v386
        %v439 = vmul.f32 %v333, %v393
        %v440 = vmul.f32 %v334, %v397
        %v441 = vmul.f32 %v335, %v404
        %v442 = vmul.f32 %v336, %v408
        %v443 = vmul.f32 %v337, %v415
        %v444 = vmul.f32 %v338, %v419
        %v445 = vmul.f32 %v339, %v426
        %v446 = vmul.f32 %v340, %v430
        %v447 = vadd.f32 %v431, %v432
        %v448 = vrot.slane %v447, 4
        %v449 = vadd.f32 %v447, %v448
        %v450 = vrot.slane %v449, 2
        %v451 = vadd.f32 %v449, %v450
        %v452 = vrot.slane %v451, 1
        %v453 = vadd.f32 %v451, %v452
        %v454 = vadd.f32 %v433, %v434
        %v455 = vrot.slane %v454, 4
        %v456 = vadd.f32 %v454, %v455
        %v457 = vrot.slane %v456, 2
        %v458 = vadd.f32 %v456, %v457
        %v459 = vrot.slane %v458, 1
        %v460 = vadd.f32 %v458, %v459
        %v461 = vadd.f32 %v435, %v436
        %v462 = vrot.slane %v461, 4
        %v463 = vadd.f32 %v461, %v462
        %v464 = vrot.slane %v463, 2
        %v465 = vadd.f32 %v463, %v464
        %v466 = vrot.slane %v465, 1
        %v467 = vadd.f32 %v465, %v466
        %v468 = vadd.f32 %v437, %v438
        %v469 = vrot.slane %v468, 4
        %v470 = vadd.f32 %v468, %v469
        %v471 = vrot.slane %v470, 2
        %v472 = vadd.f32 %v470, %v471
        %v473 = vrot.slane %v472, 1
        %v474 = vadd.f32 %v472, %v473
        %v475 = vadd.f32 %v439, %v440
        %v476 = vrot.slane %v475, 4
        %v477 = vadd.f32 %v475, %v476
        %v478 = vrot.slane %v477, 2
        %v479 = vadd.f32 %v477, %v478
        %v480 = vrot.slane %v479, 1
        %v481 = vadd.f32 %v479, %v480
        %v482 = vadd.f32 %v441, %v442
        %v483 = vrot.slane %v482, 4
        %v484 = vadd.f32 %v482, %v483
        %v485 = vrot.slane %v484, 2
        %v486 = vadd.f32 %v484, %v485
        %v487 = vrot.slane %v486, 1
        %v488 = vadd.f32 %v486, %v487
        %v489 = vadd.f32 %v443, %v444
        %v490 = vrot.slane %v489, 4
        %v491 = vadd.f32 %v489, %v490
        %v492 = vrot.slane %v491, 2
        %v493 = vadd.f32 %v491, %v492
        %v494 = vrot.slane %v493, 1
        %v495 = vadd.f32 %v493, %v494
        %v496 = vadd.f32 %v445, %v446
        %v497 = vrot.slane %v496, 4
        %v498 = vadd.f32 %v496, %v497
        %v499 = vrot.slane %v498, 2
        %v500 = vadd.f32 %v498, %v499
        %v501 = vrot.slane %v500, 1
        %v502 = vadd.f32 %v500, %v501
        %vm511 = vcmask 1041409
        %v512 = vsel %vm511, %v460, %v453
        %vm513 = vcmask 1042434
        %v514 = vsel %vm513, %v467, %v512
        %vm515 = vcmask 1043459
        %v516 = vsel %vm515, %v474, %v514
        %vm517 = vcmask 1044484
        %v518 = vsel %vm517, %v481, %v516
        %vm519 = vcmask 1045509
        %v520 = vsel %vm519, %v488, %v518
        %vm521 = vcmask 1046534
        %v522 = vsel %vm521, %v495, %v520
        %vm523 = vcmask 1047559
        %v524 = vsel %vm523, %v502, %v522
        %v526 = vadd.f32 %v342, %v524
        %527 = vst [vmem:[#allocation2] sm:$0xff] %v526
        %v528 = vld [vmem:[#allocation3] sm:$0xff]
        %vm529 = vcmask 130048
        %v530 = vsel %vm529, %v341, 0.0
        %531 = vadd.xlane.f32.xlu0 %v530
        %v532 = vpop.xlane.xlu0 %531
        %v533 = vadd.f32 %v528, %v532
        %vm534 = vcmask 7168
        %535 = vst.msk [vmem:[#allocation3] sm:$0xff] %vm534, %v533
        // Predicated region
        $region53: #{tpu_custom_call.1} parent=35 // pred_check
          %p536 = pneg %p302
        $region54: #{tpu_custom_call.1} parent=35 // pred_check_branch
          %538 = sbr.rel (%p536) target = $region56
        $region55: #{tpu_custom_call.1} parent=35 // pred_region
          %v539 = vld [vmem:[#allocation2] sm:$0xff]
          %v540 = vld [vmem:[#allocation3] sm:$0xff]
          %v541 = vmax.f32 %v540, 1.0
          %543 = vset.pattern.permute.xlu0 0
          %544 = vperm.xlu0 %543, %v541
          %v545 = vpop.permute.xlu0 %544
          %v547 = vrcp.pop %v545
          %v548 = vmul.f32 %v539, %v547
          %v549 = vld [vmem:[#allocation9] sm:$0xff]
          %v550 = vld [vmem:[#allocation9 + $0x8] sm:$0xff]
          %v551 = vld [vmem:[#allocation9 + $0x10] sm:$0xff]
          %v552 = vld [vmem:[#allocation9 + $0x18] sm:$0xff]
          %v553 = vld [vmem:[#allocation9 + $0x20] sm:$0xff]
          %v554 = vld [vmem:[#allocation9 + $0x28] sm:$0xff]
          %v555 = vld [vmem:[#allocation9 + $0x30] sm:$0xff]
          %v556 = vld [vmem:[#allocation9 + $0x38] sm:$0xff]
          %v557 = vld [vmem:[#allocation9 + $0x40] sm:$0xff]
          %v558 = vld [vmem:[#allocation9 + $0x48] sm:$0xff]
          %v559 = vld [vmem:[#allocation9 + $0x50] sm:$0xff]
          %v560 = vld [vmem:[#allocation9 + $0x58] sm:$0xff]
          %v561 = vld [vmem:[#allocation9 + $0x60] sm:$0xff]
          %v562 = vld [vmem:[#allocation9 + $0x68] sm:$0xff]
          %v563 = vld [vmem:[#allocation9 + $0x70] sm:$0xff]
          %v564 = vld [vmem:[#allocation9 + $0x78] sm:$0xff]
          %v565 = vld [vmem:[#allocation9 + $0x80] sm:$0xff]
          %v566 = vld [vmem:[#allocation9 + $0x88] sm:$0xff]
          %v567 = vld [vmem:[#allocation9 + $0x90] sm:$0xff]
          %v568 = vld [vmem:[#allocation9 + $0x98] sm:$0xff]
          %v569 = vld [vmem:[#allocation9 + $0xa0] sm:$0xff]
          %v570 = vld [vmem:[#allocation9 + $0xa8] sm:$0xff]
          %v571 = vld [vmem:[#allocation9 + $0xb0] sm:$0xff]
          %v572 = vld [vmem:[#allocation9 + $0xb8] sm:$0xff]
          %v573 = vld [vmem:[#allocation9 + $0xc0] sm:$0xff]
          %v574 = vld [vmem:[#allocation9 + $0xc8] sm:$0xff]
          %v575 = vld [vmem:[#allocation9 + $0xd0] sm:$0xff]
          %v576 = vld [vmem:[#allocation9 + $0xd8] sm:$0xff]
          %v577 = vld [vmem:[#allocation9 + $0xe0] sm:$0xff]
          %v578 = vld [vmem:[#allocation9 + $0xe8] sm:$0xff]
          %v579 = vld [vmem:[#allocation9 + $0xf0] sm:$0xff]
          %v580 = vld [vmem:[#allocation9 + $0xf8] sm:$0xff]
          %v581 = vld [vmem:[%s3] sm:$0x3]
          %v583 = vlaneseq
          %v584 = vshrl.u32 %v583, 7
          %v585 = vsub.s32 0, %v584
          %v586 = vrot.slane %v581, %v585
          %v587 = vlaneseq
          %v588 = vshrl.u32 %v587, 7
          %v589 = vsub.s32 1, %v588
          %v590 = vrot.slane %v581, %v589
          %593 = vmatprep.subr.mxu0 %v550
          %594 = vmatpush1.msra.mxu0 %v549
          %595 = vmatprep.subr.mxu0 %v552
          %596 = vmatpush1.msra.mxu0 %v551
          %597 = vmatprep.subr.mxu0 %v554
          %598 = vmatpush1.msra.mxu0 %v553
          %599 = vmatprep.subr.mxu0 %v556
          %600 = vmatpush1.msra.mxu0 %v555
          %601 = vmatprep.subr.mxu0 %v558
          %602 = vmatpush1.msra.mxu0 %v557
          %603 = vmatprep.subr.mxu0 %v560
          %604 = vmatpush1.msra.mxu0 %v559
          %605 = vmatprep.subr.mxu0 %v562
          %606 = vmatpush1.msra.mxu0 %v561
          %607 = vmatprep.subr.mxu0 %v564
          %608 = vmatpush1.msra.mxu0 %v563
          %609 = vmatprep.subr.mxu0 %v566
          %610 = vmatpush1.msra.mxu0 %v565
          %611 = vmatprep.subr.mxu0 %v568
          %612 = vmatpush1.msra.mxu0 %v567
          %613 = vmatprep.subr.mxu0 %v570
          %614 = vmatpush1.msra.mxu0 %v569
          %615 = vmatprep.subr.mxu0 %v572
          %616 = vmatpush1.msra.mxu0 %v571
          %617 = vmatprep.subr.mxu0 %v574
          %618 = vmatpush1.msra.mxu0 %v573
          %619 = vmatprep.subr.mxu0 %v576
          %620 = vmatpush1.msra.mxu0 %v575
          %621 = vmatprep.subr.mxu0 %v578
          %622 = vmatpush1.msra.mxu0 %v577
          %623 = vmatprep.subr.mxu0 %v580
          %624 = vmatpush1.msra.mxu0 %v579
          %625 = vmatprep.subr.mxu0 0.0
          %626 = vmatpush1.msra.mxu0 0.0
          %627 = vmatprep.subr.mxu0 0.0
          %628 = vmatpush1.msra.mxu0 0.0
          %629 = vmatprep.subr.mxu0 0.0
          %630 = vmatpush1.msra.mxu0 0.0
          %631 = vmatprep.subr.mxu0 0.0
          %632 = vmatpush1.msra.mxu0 0.0
          %633 = vmatprep.subr.mxu0 0.0
          %634 = vmatpush1.msra.mxu0 0.0
          %635 = vmatprep.subr.mxu0 0.0
          %636 = vmatpush1.msra.mxu0 0.0
          %637 = vmatprep.subr.mxu0 0.0
          %638 = vmatpush1.msra.mxu0 0.0
          %639 = vmatprep.subr.mxu0 0.0
          %640 = vmatpush1.msra.mxu0 0.0
          %641 = vmatprep.subr.mxu0 0.0
          %642 = vmatpush1.msra.mxu0 0.0
          %643 = vmatprep.subr.mxu0 0.0
          %644 = vmatpush1.msra.mxu0 0.0
          %645 = vmatprep.subr.mxu0 0.0
          %646 = vmatpush1.msra.mxu0 0.0
          %647 = vmatprep.subr.mxu0 0.0
          %648 = vmatpush1.msra.mxu0 0.0
          %649 = vmatprep.subr.mxu0 0.0
          %650 = vmatpush1.msra.mxu0 0.0
          %651 = vmatprep.subr.mxu0 0.0
          %652 = vmatpush1.msra.mxu0 0.0
          %653 = vmatprep.subr.mxu0 0.0
          %654 = vmatpush1.msra.mxu0 0.0
          %655 = vmatprep.subr.mxu0 0.0
          %656 = vmatpush1.msra.mxu0 0.0
          %657 = vmatprep.mubr.f32.mxu0 0.0
          %658 = vmatmul.mubr.f32.gmra.mrb[0].mxu0 %v548
          %v659 = vpop.f32.mrb[0].mxu0
          %v660 = vadd.f32 %v586, %v659
          %v661 = vpop.f32.mrb[0].mxu0
          %v662 = vadd.f32 %v590, %v661
          %663 = vdwg.mxu0
          %664 = vmax.xlane.f32.xlu0 %v660
          %v665 = vpop.xlane.xlu0 %664
          %v666 = vsub.f32 %v660, %v665
          %v667 = vmul.f32 %v666, 1.442695
          %v668 = vpow.pop %v667
          %669 = vadd.xlane.f32.xlu0 %v668
          %v670 = vpop.xlane.xlu0 %669
          %v671 = vlog2.pop %v670
          %v672 = vmul.f32 %v671, 0.6931472
          %v673 = vsub.f32 %v666, %v672
          %674 = vst [vmem:[%s294] sm:$0xff] %v673
          %675 = vmax.xlane.f32.xlu0 %v662
          %v676 = vpop.xlane.xlu0 %675
          %v677 = vsub.f32 %v662, %v676
          %v678 = vmul.f32 %v677, 1.442695
          %v679 = vpow.pop %v678
          %680 = vadd.xlane.f32.xlu0 %v679
          %v681 = vpop.xlane.xlu0 %680
          %v682 = vlog2.pop %v681
          %v683 = vmul.f32 %v682, 0.6931472
          %v684 = vsub.f32 %v677, %v683
          %685 = vst [vmem:[%s294 + $0x8] sm:$0xff] %v684
        $region56: #{tpu_custom_call.1} parent=35 // pred_fallthru
          _
        %s686 = sand.u32 %s142, 1
        %s687 = scalar_lea.sflag [#allocation6], %s686
        %s688 = sand.u32 %s142, 1
        %s689 = smul.addr %s688, 16
        %s690 = scalar_lea.vmem [#allocation10], %s689
        // Predicated region
        $region57: #{tpu_custom_call.1} parent=35 // pred_check
          %p691 = pneg %p152
        $region58: #{tpu_custom_call.1} parent=35 // pred_check_branch
          %693 = sbr.rel (%p691) target = $region60
        $region59: #{tpu_custom_call.1} parent=35 // pred_region
          %s695 = ssub.s32 256, 256
          %696 = vsyncadd %s687, %s695
          %s697 = smul.addr %s28, 2
          %s698 = smul.addr %s697, 128
          %s699 = scalar_lea.hbm %s4, %s698
          %s701 = sshll.u32 %s690, 4
          %s702 = int_to_ptr.vmem [resolvable:$true] %s701
          %704 = dma.vmem_to_hbm [thread:$0]  %s702, 256, %s699, %s687
        $region60: #{tpu_custom_call.1} parent=35 // pred_fallthru
          _
      $region36: #{tpu_custom_call.1} parent=5 // pred_fallthru
        _
      %p705 = scmp.le.s32.totalorder 2, %s19
      // Predicated region
      $region61: #{tpu_custom_call.1} parent=5 // pred_check
        %p706 = pneg %p705
      $region62: #{tpu_custom_call.1} parent=5 // pred_check_branch
        %708 = sbr.rel (%p706) target = $region64
      $region63: #{tpu_custom_call.1} parent=5 // pred_region
        %s709 = ssub.s32 %s19, 2
        // Predicated region
        $region65: #{tpu_custom_call.1} parent=63 // pred_check
          %p710 = pneg %p158
        $region66: #{tpu_custom_call.1} parent=63 // pred_check_branch
          %712 = sbr.rel (%p710) target = $region68
        $region67: #{tpu_custom_call.1} parent=63 // pred_region
          %s713 = sand.u32 %s143, 1
          %s714 = scalar_lea.sflag [#allocation6], %s713
          %s715 = sand.u32 %s143, 1
          %s716 = smul.addr %s715, 16
          %s717 = scalar_lea.vmem [#allocation10], %s716
          %718 = dma.done %s714, 256
        $region68: #{tpu_custom_call.1} parent=63 // pred_fallthru
          _
      $region64: #{tpu_custom_call.1} parent=5 // pred_fallthru
        _
    $region6: #{tpu_custom_call.1} parent=1 // loop_footer
      %s23 = sadd.s32 1, %s19
    $region7: #{tpu_custom_call.1} parent=1 // loop_footer_branch
      %18 = sbr.rel target = $region3
    $region8: #{tpu_custom_call.1} parent=1 // loop_exit
      _
    %719 = vsyncpa [#allocation5], 1
    %s720 = scalar_lea.sflag [#allocation5], 1
    %721 = vsyncpa %s720, 1
    %722 = vsyncpa [#allocation8], 1
    %s723 = scalar_lea.sflag [#allocation8], 1
    %724 = vsyncpa %s723, 1
    %725 = vsyncpa [#allocation6], 1
    %s726 = scalar_lea.sflag [#allocation6], 1
    %727 = vsyncpa %s726, 1

// kernel: tpu_custom_call.1
$region0: #{tpu_custom_call.1}
  #allocation0 [shape = 'u32[]', space=smem, size = 0x4, offset = 0x4, fixed_abs, tag = 'smem constant byte address 0x4 - core index']
  #allocation1 [shape = 'u32[144,128]{1,0:T(1,128)}', space=vmem, size = 0x12000, scoped, tag = 'internal scratch']
  #allocation2 [shape = 'f32[8,128]{1,0:T(8,128)}', space=vmem, size = 0x1000, scoped, tag = 'scratch operand']
  #allocation3 [shape = 'f32[8,1]{1,0:T(8,128)}', space=vmem, size = 0x1000, scoped, tag = 'scratch operand']
  %s0 = inlined_call_operand.hbm [shape: bf16[12,16,128], index: 0, kind: input, shape index: {}]
  %s1 = inlined_call_operand.hbm [shape: f32[12,16], index: 1, kind: input, shape index: {}]
  %s2 = inlined_call_operand.hbm [shape: f32[128,256], index: 2, kind: input, shape index: {}]
  %s3 = inlined_call_operand.vmem [shape: f32[1,256], index: 3, kind: input, shape index: {}]
  %s4 = inlined_call_operand.hbm [shape: f32[12,256], index: 4, kind: output, shape index: {}]
  %s5 = sld [smem:[#allocation0]]
  $region69: #{tpu_custom_call.1} parent=0
    _
  %s7 = ssub.s32 1, %s5
  %s8 = scalar_select 0, %s7, %s5
  $region1: #{tpu_custom_call.1} parent=0
    #allocation4 [shape = 'u8[65536]{0}', space=vmem, size = 0x10000, scoped, tag = 'input window, operand 0']
    #allocation5 [shape = 's32[2]{0}', space=sflag, size = 0x8, scoped, tag = 'scoped memory for tpu_custom_call.1']
    #allocation6 [shape = 's32[2]{0}', space=sflag, size = 0x8, scoped, tag = 'scoped memory for tpu_custom_call.1']
    #allocation7 [shape = 'u8[8192]{0}', space=vmem, size = 0x2000, scoped, tag = 'input window, operand 1']
    #allocation8 [shape = 's32[2]{0}', space=sflag, size = 0x8, scoped, tag = 'scoped memory for tpu_custom_call.1']
    #allocation9 [shape = 'u8[131072]{0}', space=vmem, size = 0x20000, scoped, tag = 'input window, operand 2, single buffered']
    #allocation10 [shape = 'u8[16384]{0}', space=vmem, size = 0x4000, scoped, tag = 'output window, operand 0']
    %9 = vsyncpa [#allocation5], 0
    %s10 = scalar_lea.sflag [#allocation5], 1
    %11 = vsyncpa %s10, 0
    %12 = vsyncpa [#allocation8], 0
    %s13 = scalar_lea.sflag [#allocation8], 1
    %14 = vsyncpa %s13, 0
    %15 = vsyncpa [#allocation6], 0
    %s16 = scalar_lea.sflag [#allocation6], 1
    %17 = vsyncpa %s16, 0
    loop: start=0, step=1, limit=4
    $region2: #{tpu_custom_call.1} parent=1 // loop_pre_header
      _
    $region3: #{tpu_custom_call.1} parent=1 // loop_header
      %s19 = sphi 0, %s23
      %p20 = scmp.ge.s32.totalorder %s19, 4
      %s26 = sphi 0, %s38
      %s27 = sphi 0, %s34
      %s28 = sphi 0, %s26
      %s29 = sphi 0, %s27
      %s30 = sphi 0, %s28
      %s31 = sphi 0, %s29
      %s43 = sphi 0, %s45
      %s46 = sphi 0, %s43
      %s47 = sphi 0, %s46
      %s63 = sphi 0, %s47
      %s71 = sphi 0, %s73
      %s74 = sphi 0, %s71
      %s75 = sphi 0, %s74
      %s91 = sphi 0, %s75
      %s95 = sphi 0, %s95
      %s97 = sphi 0, %s95
      %s98 = sphi 0, %s97
      %s112 = sphi 0, %s98
      %s116 = sphi 0, %s116
      %s118 = sphi 0, %s116
      %s119 = sphi 0, %s118
      %s133 = sphi 0, %s119
      %s139 = sphi 0, %s141
      %s142 = sphi 0, %s139
      %s143 = sphi 0, %s142
      %s159 = sphi 0, %s143
    $region4: #{tpu_custom_call.1} parent=1 // loop_header_branch
      %22 = sbr.rel (%p20) target = $region8
    $region5: #{tpu_custom_call.1} parent=1 // loop_body
      %s24 = ssub.s32 %s19, 1
      %s25 = ssub.s32 %s19, 2
      %s32 = sadd.s32 1, %s27
      %p33 = scmp.ge.s32.totalorder %s32, 1
      %s34 = scalar_select %p33, 0, %s32
      %s35 = sadd.s32 1, %s26
      %s36 = scalar_select %p33, %s35, %s26
      %p37 = scmp.ge.s32.totalorder %s36, 2
      %s38 = scalar_select %p37, 0, %s36
      %s39 = ssub.s32 %s26, %s38
      %s40 = ssub.s32 %s27, %s34
      %s41 = sor.u32 %s39, %s40
      %p42 = scmp.eq.s32.totalorder %s41, 0
      %s44 = sadd.s32 %s43, 1
      %s45 = scalar_select %p42, %s43, %s44
      %p48 = pneg %p42
      %p49 = scmp.eq.s32.totalorder %s19, 1
      %p50 = por %p48, %p49
      %p51 = scmp.ne.s32.totalorder %s43, %s46
      %p52 = scmp.eq.s32.totalorder %s19, 0
      %p53 = por %p51, %p52
      %p54 = scmp.ne.s32.totalorder %s43, %s46
      %p55 = scmp.eq.s32.totalorder %s24, 1
      %p56 = por %p54, %p55
      %p57 = scmp.ne.s32.totalorder %s46, %s47
      %p58 = scmp.eq.s32.totalorder %s24, 0
      %p59 = por %p57, %p58
      %p60 = scmp.ne.s32.totalorder %s46, %s47
      %p61 = scmp.eq.s32.totalorder %s25, 1
      %p62 = por %p60, %p61
      %p64 = scmp.ne.s32.totalorder %s47, %s63
      %p65 = scmp.eq.s32.totalorder %s25, 0
      %p66 = por %p64, %p65
      %s67 = ssub.s32 %s26, %s38
      %s68 = ssub.s32 %s27, %s34
      %s69 = sor.u32 %s67, %s68
      %p70 = scmp.eq.s32.totalorder %s69, 0
      %s72 = sadd.s32 %s71, 1
      %s73 = scalar_select %p70, %s71, %s72
      %p76 = pneg %p70
      %p77 = scmp.eq.s32.totalorder %s19, 1
      %p78 = por %p76, %p77
      %p79 = scmp.ne.s32.totalorder %s71, %s74
      %p80 = scmp.eq.s32.totalorder %s19, 0
      %p81 = por %p79, %p80
      %p82 = scmp.ne.s32.totalorder %s71, %s74
      %p83 = scmp.eq.s32.totalorder %s24, 1
      %p84 = por %p82, %p83
      %p85 = scmp.ne.s32.totalorder %s74, %s75
      %p86 = scmp.eq.s32.totalorder %s24, 0
      %p87 = por %p85, %p86
      %p88 = scmp.ne.s32.totalorder %s74, %s75
      %p89 = scmp.eq.s32.totalorder %s25, 1
      %p90 = por %p88, %p89
      %p92 = scmp.ne.s32.totalorder %s75, %s91
      %p93 = scmp.eq.s32.totalorder %s25, 0
      %p94 = por %p92, %p93
      %s96 = sadd.s32 %s95, 1
      %p99 = scmp.eq.s32.totalorder %s19, 1
      %p100 = scmp.ne.s32.totalorder %s95, %s97
      %p101 = scmp.eq.s32.totalorder %s19, 0
      %p102 = por %p100, %p101
      %p103 = scmp.ne.s32.totalorder %s95, %s97
      %p104 = scmp.eq.s32.totalorder %s24, 1
      %p105 = por %p103, %p104
      %p106 = scmp.ne.s32.totalorder %s97, %s98
      %p107 = scmp.eq.s32.totalorder %s24, 0
      %p108 = por %p106, %p107
      %p109 = scmp.ne.s32.totalorder %s97, %s98
      %p110 = scmp.eq.s32.totalorder %s25, 1
      %p111 = por %p109, %p110
      %p113 = scmp.ne.s32.totalorder %s98, %s112
      %p114 = scmp.eq.s32.totalorder %s25, 0
      %p115 = por %p113, %p114
      %s117 = sadd.s32 %s116, 1
      %p120 = scmp.eq.s32.totalorder %s19, 1
      %p121 = scmp.ne.s32.totalorder %s116, %s118
      %p122 = scmp.eq.s32.totalorder %s19, 0
      %p123 = por %p121, %p122
      %p124 = scmp.ne.s32.totalorder %s116, %s118
      %p125 = scmp.eq.s32.totalorder %s24, 1
      %p126 = por %p124, %p125
      %p127 = scmp.ne.s32.totalorder %s118, %s119
      %p128 = scmp.eq.s32.totalorder %s24, 0
      %p129 = por %p127, %p128
      %p130 = scmp.ne.s32.totalorder %s118, %s119
      %p131 = scmp.eq.s32.totalorder %s25, 1
      %p132 = por %p130, %p131
      %p134 = scmp.ne.s32.totalorder %s119, %s133
      %p135 = scmp.eq.s32.totalorder %s25, 0
      %p136 = por %p134, %p135
      %s137 = ssub.s32 %s26, %s38
      %p138 = scmp.eq.s32.totalorder %s137, 0
      %s140 = sadd.s32 %s139, 1
      %s141 = scalar_select %p138, %s139, %s140
      %p144 = pneg %p138
      %p145 = scmp.eq.s32.totalorder %s19, 1
      %p146 = por %p144, %p145
      %p147 = scmp.ne.s32.totalorder %s139, %s142
      %p148 = scmp.eq.s32.totalorder %s19, 0
      %p149 = por %p147, %p148
      %p150 = scmp.ne.s32.totalorder %s139, %s142
      %p151 = scmp.eq.s32.totalorder %s24, 1
      %p152 = por %p150, %p151
      %p153 = scmp.ne.s32.totalorder %s142, %s143
      %p154 = scmp.eq.s32.totalorder %s24, 0
      %p155 = por %p153, %p154
      %p156 = scmp.ne.s32.totalorder %s142, %s143
      %p157 = scmp.eq.s32.totalorder %s25, 1
      %p158 = por %p156, %p157
      %p160 = scmp.ne.s32.totalorder %s143, %s159
      %p161 = scmp.eq.s32.totalorder %s25, 0
      %p162 = por %p160, %p161
      %p163 = scmp.le.s32.totalorder 1, %s19
      %p164 = scmp.lt.s32.totalorder %s19, 3
      %p165 = pnand %p163, %p164
      %p166 = pneg %p165
      // Predicated region
      $region9: #{tpu_custom_call.1} parent=5 // pred_check
        _
      $region10: #{tpu_custom_call.1} parent=5 // pred_check_branch
        %168 = sbr.rel (%p165) target = $region12
      $region11: #{tpu_custom_call.1} parent=5 // pred_region
        %s169 = ssub.s32 %s19, 1
        // Predicated region
        $region13: #{tpu_custom_call.1} parent=11 // pred_check
          %p170 = pneg %p108
        $region14: #{tpu_custom_call.1} parent=11 // pred_check_branch
          %172 = sbr.rel (%p170) target = $region16
        $region15: #{tpu_custom_call.1} parent=11 // pred_region
          %s174 = ssub.s32 4096, 4096
          %175 = vsyncadd [#allocation8], %s174
          %s176 = sshll.u32 [#allocation9], 4
          %s177 = int_to_ptr.vmem [resolvable:$true] %s176
          %182 = dma.hbm_to_vmem [thread:$0]  %s2, 4096, %s177, [#allocation8], 256, 256, 16
        $region16: #{tpu_custom_call.1} parent=11 // pred_fallthru
          _
        // Predicated region
        $region17: #{tpu_custom_call.1} parent=11 // pred_check
          %p183 = pneg %p129
        $region18: #{tpu_custom_call.1} parent=11 // pred_check_branch
          %185 = sbr.rel (%p183) target = $region20
        $region19: #{tpu_custom_call.1} parent=11 // pred_region
          _
        $region20: #{tpu_custom_call.1} parent=11 // pred_fallthru
          _
      $region12: #{tpu_custom_call.1} parent=5 // pred_fallthru
        _
      %p186 = scmp.lt.s32.totalorder %s19, 2
      // Predicated region
      $region21: #{tpu_custom_call.1} parent=5 // pred_check
        %p187 = pneg %p186
      $region22: #{tpu_custom_call.1} parent=5 // pred_check_branch
        %189 = sbr.rel (%p187) target = $region24
      $region23: #{tpu_custom_call.1} parent=5 // pred_region
        // Predicated region
        $region25: #{tpu_custom_call.1} parent=23 // pred_check
          %p190 = pneg %p53
        $region26: #{tpu_custom_call.1} parent=23 // pred_check_branch
          %192 = sbr.rel (%p190) target = $region28
        $region27: #{tpu_custom_call.1} parent=23 // pred_region
          %s193 = sand.u32 %s43, 1
          %s194 = scalar_lea.sflag [#allocation5], %s193
          %s195 = sand.u32 %s43, 1
          %s196 = smul.addr %s195, 64
          %s197 = scalar_lea.vmem [#allocation4], %s196
          %s198 = smul.u32 8, %s26
          %s199 = smul.u32 2, %s27
          %s200 = ssub.s32 12, %s198
          %p201 = scmp.lt.s32.totalorder %s200, 8
          %s202 = scalar_select %p201, %s200, 8
          %s203 = smul.u32 64, %s202
          %s204 = smul.u32 %s203, 2
          %s206 = ssub.s32 1024, %s204
          %207 = vsyncadd %s194, %s206
          %p208 = scmp.ne.s32.totalorder 0, %s204
          %s209 = smul.addr %s198, 2
          %s210 = sadd.s32 %s199, %s209
          %s211 = smul.addr %s210, 64
          %s212 = scalar_lea.hbm %s0, %s211
          %s213 = smul.u32 %s202, 2
          %s214 = smul.u32 4, %s213
          %s215 = sshll.u32 %s197, 4
          %s216 = int_to_ptr.vmem [resolvable:$true] %s215
          %s217 = sshll.u32 %s214, 4
          %221 = dma.hbm_to_vmem [thread:$0]  (%p208), %s212, %s217, %s216, %s194, 64, 64, 4
        $region28: #{tpu_custom_call.1} parent=23 // pred_fallthru
          _
        // Predicated region
        $region29: #{tpu_custom_call.1} parent=23 // pred_check
          %p222 = pneg %p81
        $region30: #{tpu_custom_call.1} parent=23 // pred_check_branch
          %224 = sbr.rel (%p222) target = $region32
        $region31: #{tpu_custom_call.1} parent=23 // pred_region
          %s225 = sand.u32 %s19, 1
          %s226 = scalar_lea.sflag [#allocation8], %s225
          %s227 = sand.u32 %s71, 1
          %s228 = smul.addr %s227, 8
          %s229 = scalar_lea.vmem [#allocation7], %s228
          %s231 = ssub.s32 128, 128
          %232 = vsyncadd %s226, %s231
          %s233 = sadd.s32 %s27, %s26
          %s234 = smul.addr %s233, 128
          %s235 = scalar_lea.hbm %s1, %s234
          %s237 = sshll.u32 %s229, 4
          %s238 = int_to_ptr.vmem [resolvable:$true] %s237
          %240 = dma.hbm_to_vmem [thread:$0]  %s235, 128, %s238, %s226
        $region32: #{tpu_custom_call.1} parent=23 // pred_fallthru
          _
      $region24: #{tpu_custom_call.1} parent=5 // pred_fallthru
        _
      %p241 = scmp.le.s32.totalorder 1, %s19
      %p242 = scmp.lt.s32.totalorder %s19, 3
      %p243 = pnand %p241, %p242
      %p244 = pneg %p243
      // Predicated region
      $region33: #{tpu_custom_call.1} parent=5 // pred_check
        _
      $region34: #{tpu_custom_call.1} parent=5 // pred_check_branch
        %246 = sbr.rel (%p243) target = $region36
      $region35: #{tpu_custom_call.1} parent=5 // pred_region
        %s247 = ssub.s32 %s19, 1
        %s248 = sand.u32 %s46, 1
        %s249 = scalar_lea.sflag [#allocation5], %s248
        %s250 = sand.u32 %s46, 1
        %s251 = smul.addr %s250, 64
        %s252 = scalar_lea.vmem [#allocation4], %s251
        // Predicated region
        $region37: #{tpu_custom_call.1} parent=35 // pred_check
          %p253 = pneg %p59
        $region38: #{tpu_custom_call.1} parent=35 // pred_check_branch
          %255 = sbr.rel (%p253) target = $region40
        $region39: #{tpu_custom_call.1} parent=35 // pred_region
          %256 = dma.done %s249, 1024
        $region40: #{tpu_custom_call.1} parent=35 // pred_fallthru
          _
        %s257 = sand.u32 %s24, 1
        %s258 = scalar_lea.sflag [#allocation8], %s257
        %s259 = sand.u32 %s74, 1
        %s260 = smul.addr %s259, 8
        %s261 = scalar_lea.vmem [#allocation7], %s260
        // Predicated region
        $region41: #{tpu_custom_call.1} parent=35 // pred_check
          %p262 = pneg %p87
        $region42: #{tpu_custom_call.1} parent=35 // pred_check_branch
          %264 = sbr.rel (%p262) target = $region44
        $region43: #{tpu_custom_call.1} parent=35 // pred_region
          %265 = dma.done %s258, 128
        $region44: #{tpu_custom_call.1} parent=35 // pred_fallthru
          _
        // Predicated region
        $region45: #{tpu_custom_call.1} parent=35 // pred_check
          %p266 = pneg %p108
        $region46: #{tpu_custom_call.1} parent=35 // pred_check_branch
          %268 = sbr.rel (%p266) target = $region48
        $region47: #{tpu_custom_call.1} parent=35 // pred_region
          %269 = dma.done [#allocation8], 4096
        $region48: #{tpu_custom_call.1} parent=35 // pred_fallthru
          _
        %s270 = sand.u32 %s46, 1
        %s271 = scalar_lea.sflag [#allocation5], %s270
        %s272 = sand.u32 %s46, 1
        %s273 = smul.addr %s272, 64
        %s274 = scalar_lea.vmem [#allocation4], %s273
        %p275 = pneg %p59
        %p276 = pneg %p56
        %s277 = sand.u32 %s24, 1
        %s278 = scalar_lea.sflag [#allocation8], %s277
        %s279 = sand.u32 %s74, 1
        %s280 = smul.addr %s279, 8
        %s281 = scalar_lea.vmem [#allocation7], %s280
        %p282 = pneg %p87
        %p283 = pneg %p84
        %p284 = pneg %p108
        %p285 = pneg %p105
        %p286 = pneg %p129
        %p287 = pneg %p126
        %p288 = pneg %p155
        %p289 = pneg %p152
        %s290 = sand.u32 %s142, 1
        %s291 = scalar_lea.sflag [#allocation6], %s290
        %s292 = sand.u32 %s142, 1
        %s293 = smul.addr %s292, 16
        %s294 = scalar_lea.vmem [#allocation10], %s293
        %s295 = smul.u32 8, %s28
        %s296 = smul.u32 2, %s29
        %s297 = ssub.s32 12, %s295
        %p298 = scmp.lt.s32.totalorder %s297, 8
        %s299 = scalar_select %p298, %s297, 8
        %s300 = smul.u32 64, %s299
        %s301 = smul.u32 %s300, 2
        %p302 = scmp.eq.s32.totalorder %s29, 0
        // Predicated region
        $region49: #{tpu_custom_call.1} parent=35 // pred_check
          %p303 = pneg %p302
        $region50: #{tpu_custom_call.1} parent=35 // pred_check_branch
          %305 = sbr.rel (%p303) target = $region52
        $region51: #{tpu_custom_call.1} parent=35 // pred_region
          %306 = vst [vmem:[#allocation2] sm:$0xff] 0.0
          %vm307 = vcmask 7168
          %308 = vst.msk [vmem:[#allocation3] sm:$0xff] %vm307, 0.0
        $region52: #{tpu_custom_call.1} parent=35 // pred_fallthru
          _
        %v309 = vld [vmem:[%s252] sm:$0xf]
        %v310 = vld [vmem:[%s252 + $0x4] sm:$0xf]
        %v311 = vld [vmem:[%s252 + $0x8] sm:$0xf]
        %v312 = vld [vmem:[%s252 + $0xc] sm:$0xf]
        %v313 = vld [vmem:[%s252 + $0x10] sm:$0xf]
        %v314 = vld [vmem:[%s252 + $0x14] sm:$0xf]
        %v315 = vld [vmem:[%s252 + $0x18] sm:$0xf]
        %v316 = vld [vmem:[%s252 + $0x1c] sm:$0xf]
        %v317 = vld [vmem:[%s252 + $0x20] sm:$0xf]
        %v318 = vld [vmem:[%s252 + $0x24] sm:$0xf]
        %v319 = vld [vmem:[%s252 + $0x28] sm:$0xf]
        %v320 = vld [vmem:[%s252 + $0x2c] sm:$0xf]
        %v321 = vld [vmem:[%s252 + $0x30] sm:$0xf]
        %v322 = vld [vmem:[%s252 + $0x34] sm:$0xf]
        %v323 = vld [vmem:[%s252 + $0x38] sm:$0xf]
        %v324 = vld [vmem:[%s252 + $0x3c] sm:$0xf]
        %v325 = vunpack.c.l.bf16 %v309
        %v326 = vunpack.c.l.bf16 %v310
        %v327 = vunpack.c.l.bf16 %v311
        %v328 = vunpack.c.l.bf16 %v312
        %v329 = vunpack.c.l.bf16 %v313
        %v330 = vunpack.c.l.bf16 %v314
        %v331 = vunpack.c.l.bf16 %v315
        %v332 = vunpack.c.l.bf16 %v316
        %v333 = vunpack.c.l.bf16 %v317
        %v334 = vunpack.c.l.bf16 %v318
        %v335 = vunpack.c.l.bf16 %v319
        %v336 = vunpack.c.l.bf16 %v320
        %v337 = vunpack.c.l.bf16 %v321
        %v338 = vunpack.c.l.bf16 %v322
        %v339 = vunpack.c.l.bf16 %v323
        %v340 = vunpack.c.l.bf16 %v324
        %v341 = vld [vmem:[%s261] sm:$0xff]
        %v342 = vld [vmem:[#allocation2] sm:$0xff]
        %v343 = vlaneseq
        %v344 = vshrl.u32 %v343, 7
        %v345 = vsub.s32 0, %v344
        %v346 = vrot.slane %v341, %v345
        %348 = vbcast.lane.b32.xlu0 %v346, 256
        %v349 = vpop.permute.xlu0 %348
        %s351 = sor.u32 256, 8
        %352 = vbcast.lane.b32.xlu0 %v346, %s351
        %v353 = vpop.permute.xlu0 %352
        %v354 = vlaneseq
        %v355 = vshrl.u32 %v354, 7
        %v356 = vsub.s32 1, %v355
        %v357 = vrot.slane %v341, %v356
        %359 = vbcast.lane.b32.xlu0 %v357, 256
        %v360 = vpop.permute.xlu0 %359
        %s362 = sor.u32 256, 8
        %363 = vbcast.lane.b32.xlu0 %v357, %s362
        %v364 = vpop.permute.xlu0 %363
        %v365 = vlaneseq
        %v366 = vshrl.u32 %v365, 7
        %v367 = vsub.s32 2, %v366
        %v368 = vrot.slane %v341, %v367
        %370 = vbcast.lane.b32.xlu0 %v368, 256
        %v371 = vpop.permute.xlu0 %370
        %s373 = sor.u32 256, 8
        %374 = vbcast.lane.b32.xlu0 %v368, %s373
        %v375 = vpop.permute.xlu0 %374
        %v376 = vlaneseq
        %v377 = vshrl.u32 %v376, 7
        %v378 = vsub.s32 3, %v377
        %v379 = vrot.slane %v341, %v378
        %381 = vbcast.lane.b32.xlu0 %v379, 256
        %v382 = vpop.permute.xlu0 %381
        %s384 = sor.u32 256, 8
        %385 = vbcast.lane.b32.xlu0 %v379, %s384
        %v386 = vpop.permute.xlu0 %385
        %v387 = vlaneseq
        %v388 = vshrl.u32 %v387, 7
        %v389 = vsub.s32 4, %v388
        %v390 = vrot.slane %v341, %v389
        %392 = vbcast.lane.b32.xlu0 %v390, 256
        %v393 = vpop.permute.xlu0 %392
        %s395 = sor.u32 256, 8
        %396 = vbcast.lane.b32.xlu0 %v390, %s395
        %v397 = vpop.permute.xlu0 %396
        %v398 = vlaneseq
        %v399 = vshrl.u32 %v398, 7
        %v400 = vsub.s32 5, %v399
        %v401 = vrot.slane %v341, %v400
        %403 = vbcast.lane.b32.xlu0 %v401, 256
        %v404 = vpop.permute.xlu0 %403
        %s406 = sor.u32 256, 8
        %407 = vbcast.lane.b32.xlu0 %v401, %s406
        %v408 = vpop.permute.xlu0 %407
        %v409 = vlaneseq
        %v410 = vshrl.u32 %v409, 7
        %v411 = vsub.s32 6, %v410
        %v412 = vrot.slane %v341, %v411
        %414 = vbcast.lane.b32.xlu0 %v412, 256
        %v415 = vpop.permute.xlu0 %414
        %s417 = sor.u32 256, 8
        %418 = vbcast.lane.b32.xlu0 %v412, %s417
        %v419 = vpop.permute.xlu0 %418
        %v420 = vlaneseq
        %v421 = vshrl.u32 %v420, 7
        %v422 = vsub.s32 7, %v421
        %v423 = vrot.slane %v341, %v422
        %425 = vbcast.lane.b32.xlu0 %v423, 256
        %v426 = vpop.permute.xlu0 %425
        %s428 = sor.u32 256, 8
        %429 = vbcast.lane.b32.xlu0 %v423, %s428
        %v430 = vpop.permute.xlu0 %429
        %v431 = vmul.f32 %v325, %v349
        %v432 = vmul.f32 %v326, %v353
        %v433 = vmul.f32 %v327, %v360
        %v434 = vmul.f32 %v328, %v364
        %v435 = vmul.f32 %v329, %v371
        %v436 = vmul.f32 %v330, %v375
        %v437 = vmul.f32 %v331, %v382
        %v438 = vmul.f32 %v332, %v386
        %v439 = vmul.f32 %v333, %v393
        %v440 = vmul.f32 %v334, %v397
        %v441 = vmul.f32 %v335, %v404
        %v442 = vmul.f32 %v336, %v408
        %v443 = vmul.f32 %v337, %v415
        %v444 = vmul.f32 %v338, %v419
        %v445 = vmul.f32 %v339, %v426
        %v446 = vmul.f32 %v340, %v430
        %v447 = vadd.f32 %v431, %v432
        %v448 = vrot.slane %v447, 4
        %v449 = vadd.f32 %v447, %v448
        %v450 = vrot.slane %v449, 2
        %v451 = vadd.f32 %v449, %v450
        %v452 = vrot.slane %v451, 1
        %v453 = vadd.f32 %v451, %v452
        %v454 = vadd.f32 %v433, %v434
        %v455 = vrot.slane %v454, 4
        %v456 = vadd.f32 %v454, %v455
        %v457 = vrot.slane %v456, 2
        %v458 = vadd.f32 %v456, %v457
        %v459 = vrot.slane %v458, 1
        %v460 = vadd.f32 %v458, %v459
        %v461 = vadd.f32 %v435, %v436
        %v462 = vrot.slane %v461, 4
        %v463 = vadd.f32 %v461, %v462
        %v464 = vrot.slane %v463, 2
        %v465 = vadd.f32 %v463, %v464
        %v466 = vrot.slane %v465, 1
        %v467 = vadd.f32 %v465, %v466
        %v468 = vadd.f32 %v437, %v438
        %v469 = vrot.slane %v468, 4
        %v470 = vadd.f32 %v468, %v469
        %v471 = vrot.slane %v470, 2
        %v472 = vadd.f32 %v470, %v471
        %v473 = vrot.slane %v472, 1
        %v474 = vadd.f32 %v472, %v473
        %v475 = vadd.f32 %v439, %v440
        %v476 = vrot.slane %v475, 4
        %v477 = vadd.f32 %v475, %v476
        %v478 = vrot.slane %v477, 2
        %v479 = vadd.f32 %v477, %v478
        %v480 = vrot.slane %v479, 1
        %v481 = vadd.f32 %v479, %v480
        %v482 = vadd.f32 %v441, %v442
        %v483 = vrot.slane %v482, 4
        %v484 = vadd.f32 %v482, %v483
        %v485 = vrot.slane %v484, 2
        %v486 = vadd.f32 %v484, %v485
        %v487 = vrot.slane %v486, 1
        %v488 = vadd.f32 %v486, %v487
        %v489 = vadd.f32 %v443, %v444
        %v490 = vrot.slane %v489, 4
        %v491 = vadd.f32 %v489, %v490
        %v492 = vrot.slane %v491, 2
        %v493 = vadd.f32 %v491, %v492
        %v494 = vrot.slane %v493, 1
        %v495 = vadd.f32 %v493, %v494
        %v496 = vadd.f32 %v445, %v446
        %v497 = vrot.slane %v496, 4
        %v498 = vadd.f32 %v496, %v497
        %v499 = vrot.slane %v498, 2
        %v500 = vadd.f32 %v498, %v499
        %v501 = vrot.slane %v500, 1
        %v502 = vadd.f32 %v500, %v501
        %vm511 = vcmask 1041409
        %v512 = vsel %vm511, %v460, %v453
        %vm513 = vcmask 1042434
        %v514 = vsel %vm513, %v467, %v512
        %vm515 = vcmask 1043459
        %v516 = vsel %vm515, %v474, %v514
        %vm517 = vcmask 1044484
        %v518 = vsel %vm517, %v481, %v516
        %vm519 = vcmask 1045509
        %v520 = vsel %vm519, %v488, %v518
        %vm521 = vcmask 1046534
        %v522 = vsel %vm521, %v495, %v520
        %vm523 = vcmask 1047559
        %v524 = vsel %vm523, %v502, %v522
        %v526 = vadd.f32 %v342, %v524
        %527 = vst [vmem:[#allocation2] sm:$0xff] %v526
        %v528 = vld [vmem:[#allocation3] sm:$0xff]
        %vm529 = vcmask 130048
        %v530 = vsel %vm529, %v341, 0.0
        %531 = vadd.xlane.f32.xlu0 %v530
        %v532 = vpop.xlane.xlu0 %531
        %v533 = vadd.f32 %v528, %v532
        %vm534 = vcmask 7168
        %535 = vst.msk [vmem:[#allocation3] sm:$0xff] %vm534, %v533
        // Predicated region
        $region53: #{tpu_custom_call.1} parent=35 // pred_check
          %p536 = pneg %p302
        $region54: #{tpu_custom_call.1} parent=35 // pred_check_branch
          %538 = sbr.rel (%p536) target = $region56
        $region55: #{tpu_custom_call.1} parent=35 // pred_region
          %v539 = vld [vmem:[#allocation2] sm:$0xff]
          %v540 = vld [vmem:[#allocation3] sm:$0xff]
          %v541 = vmax.f32 %v540, 1.0
          %543 = vset.pattern.permute.xlu0 0
          %544 = vperm.xlu0 %543, %v541
          %v545 = vpop.permute.xlu0 %544
          %v547 = vrcp.pop %v545
          %v548 = vmul.f32 %v539, %v547
          %v549 = vld [vmem:[#allocation9] sm:$0xff]
          %v550 = vld [vmem:[#allocation9 + $0x8] sm:$0xff]
          %v551 = vld [vmem:[#allocation9 + $0x10] sm:$0xff]
          %v552 = vld [vmem:[#allocation9 + $0x18] sm:$0xff]
          %v553 = vld [vmem:[#allocation9 + $0x20] sm:$0xff]
          %v554 = vld [vmem:[#allocation9 + $0x28] sm:$0xff]
          %v555 = vld [vmem:[#allocation9 + $0x30] sm:$0xff]
          %v556 = vld [vmem:[#allocation9 + $0x38] sm:$0xff]
          %v557 = vld [vmem:[#allocation9 + $0x40] sm:$0xff]
          %v558 = vld [vmem:[#allocation9 + $0x48] sm:$0xff]
          %v559 = vld [vmem:[#allocation9 + $0x50] sm:$0xff]
          %v560 = vld [vmem:[#allocation9 + $0x58] sm:$0xff]
          %v561 = vld [vmem:[#allocation9 + $0x60] sm:$0xff]
          %v562 = vld [vmem:[#allocation9 + $0x68] sm:$0xff]
          %v563 = vld [vmem:[#allocation9 + $0x70] sm:$0xff]
          %v564 = vld [vmem:[#allocation9 + $0x78] sm:$0xff]
          %v565 = vld [vmem:[#allocation9 + $0x80] sm:$0xff]
          %v566 = vld [vmem:[#allocation9 + $0x88] sm:$0xff]
          %v567 = vld [vmem:[#allocation9 + $0x90] sm:$0xff]
          %v568 = vld [vmem:[#allocation9 + $0x98] sm:$0xff]
          %v569 = vld [vmem:[#allocation9 + $0xa0] sm:$0xff]
          %v570 = vld [vmem:[#allocation9 + $0xa8] sm:$0xff]
          %v571 = vld [vmem:[#allocation9 + $0xb0] sm:$0xff]
          %v572 = vld [vmem:[#allocation9 + $0xb8] sm:$0xff]
          %v573 = vld [vmem:[#allocation9 + $0xc0] sm:$0xff]
          %v574 = vld [vmem:[#allocation9 + $0xc8] sm:$0xff]
          %v575 = vld [vmem:[#allocation9 + $0xd0] sm:$0xff]
          %v576 = vld [vmem:[#allocation9 + $0xd8] sm:$0xff]
          %v577 = vld [vmem:[#allocation9 + $0xe0] sm:$0xff]
          %v578 = vld [vmem:[#allocation9 + $0xe8] sm:$0xff]
          %v579 = vld [vmem:[#allocation9 + $0xf0] sm:$0xff]
          %v580 = vld [vmem:[#allocation9 + $0xf8] sm:$0xff]
          %v581 = vld [vmem:[%s3] sm:$0x3]
          %v583 = vlaneseq
          %v584 = vshrl.u32 %v583, 7
          %v585 = vsub.s32 0, %v584
          %v586 = vrot.slane %v581, %v585
          %v587 = vlaneseq
          %v588 = vshrl.u32 %v587, 7
          %v589 = vsub.s32 1, %v588
          %v590 = vrot.slane %v581, %v589
          %593 = vmatprep.subr.mxu0 %v550
          %594 = vmatpush1.msra.mxu0 %v549
          %595 = vmatprep.subr.mxu0 %v552
          %596 = vmatpush1.msra.mxu0 %v551
          %597 = vmatprep.subr.mxu0 %v554
          %598 = vmatpush1.msra.mxu0 %v553
          %599 = vmatprep.subr.mxu0 %v556
          %600 = vmatpush1.msra.mxu0 %v555
          %601 = vmatprep.subr.mxu0 %v558
          %602 = vmatpush1.msra.mxu0 %v557
          %603 = vmatprep.subr.mxu0 %v560
          %604 = vmatpush1.msra.mxu0 %v559
          %605 = vmatprep.subr.mxu0 %v562
          %606 = vmatpush1.msra.mxu0 %v561
          %607 = vmatprep.subr.mxu0 %v564
          %608 = vmatpush1.msra.mxu0 %v563
          %609 = vmatprep.subr.mxu0 %v566
          %610 = vmatpush1.msra.mxu0 %v565
          %611 = vmatprep.subr.mxu0 %v568
          %612 = vmatpush1.msra.mxu0 %v567
          %613 = vmatprep.subr.mxu0 %v570
          %614 = vmatpush1.msra.mxu0 %v569
          %615 = vmatprep.subr.mxu0 %v572
          %616 = vmatpush1.msra.mxu0 %v571
          %617 = vmatprep.subr.mxu0 %v574
          %618 = vmatpush1.msra.mxu0 %v573
          %619 = vmatprep.subr.mxu0 %v576
          %620 = vmatpush1.msra.mxu0 %v575
          %621 = vmatprep.subr.mxu0 %v578
          %622 = vmatpush1.msra.mxu0 %v577
          %623 = vmatprep.subr.mxu0 %v580
          %624 = vmatpush1.msra.mxu0 %v579
          %625 = vmatprep.subr.mxu0 0.0
          %626 = vmatpush1.msra.mxu0 0.0
          %627 = vmatprep.subr.mxu0 0.0
          %628 = vmatpush1.msra.mxu0 0.0
          %629 = vmatprep.subr.mxu0 0.0
          %630 = vmatpush1.msra.mxu0 0.0
          %631 = vmatprep.subr.mxu0 0.0
          %632 = vmatpush1.msra.mxu0 0.0
          %633 = vmatprep.subr.mxu0 0.0
          %634 = vmatpush1.msra.mxu0 0.0
          %635 = vmatprep.subr.mxu0 0.0
          %636 = vmatpush1.msra.mxu0 0.0
          %637 = vmatprep.subr.mxu0 0.0
          %638 = vmatpush1.msra.mxu0 0.0
          %639 = vmatprep.subr.mxu0 0.0
          %640 = vmatpush1.msra.mxu0 0.0
          %641 = vmatprep.subr.mxu0 0.0
          %642 = vmatpush1.msra.mxu0 0.0
          %643 = vmatprep.subr.mxu0 0.0
          %644 = vmatpush1.msra.mxu0 0.0
          %645 = vmatprep.subr.mxu0 0.0
          %646 = vmatpush1.msra.mxu0 0.0
          %647 = vmatprep.subr.mxu0 0.0
          %648 = vmatpush1.msra.mxu0 0.0
          %649 = vmatprep.subr.mxu0 0.0
          %650 = vmatpush1.msra.mxu0 0.0
          %651 = vmatprep.subr.mxu0 0.0
          %652 = vmatpush1.msra.mxu0 0.0
          %653 = vmatprep.subr.mxu0 0.0
          %654 = vmatpush1.msra.mxu0 0.0
          %655 = vmatprep.subr.mxu0 0.0
          %656 = vmatpush1.msra.mxu0 0.0
          %657 = vmatprep.mubr.f32.mxu0 0.0
          %658 = vmatmul.mubr.f32.gmra.mrb[0].mxu0 %v548
          %v659 = vpop.f32.mrb[0].mxu0
          %v660 = vadd.f32 %v586, %v659
          %v661 = vpop.f32.mrb[0].mxu0
          %v662 = vadd.f32 %v590, %v661
          %663 = vdwg.mxu0
          %664 = vmax.xlane.f32.xlu0 %v660
          %v665 = vpop.xlane.xlu0 %664
          %v666 = vsub.f32 %v660, %v665
          %v667 = vmul.f32 %v666, 1.442695
          %v668 = vpow.pop %v667
          %669 = vadd.xlane.f32.xlu0 %v668
          %v670 = vpop.xlane.xlu0 %669
          %v671 = vlog2.pop %v670
          %v672 = vmul.f32 %v671, 0.6931472
          %v673 = vsub.f32 %v666, %v672
          %674 = vst [vmem:[%s294] sm:$0xff] %v673
          %675 = vmax.xlane.f32.xlu0 %v662
          %v676 = vpop.xlane.xlu0 %675
          %v677 = vsub.f32 %v662, %v676
          %v678 = vmul.f32 %v677, 1.442695
          %v679 = vpow.pop %v678
          %680 = vadd.xlane.f32.xlu0 %v679
          %v681 = vpop.xlane.xlu0 %680
          %v682 = vlog2.pop %v681
          %v683 = vmul.f32 %v682, 0.6931472
          %v684 = vsub.f32 %v677, %v683
          %685 = vst [vmem:[%s294 + $0x8] sm:$0xff] %v684
        $region56: #{tpu_custom_call.1} parent=35 // pred_fallthru
          _
        %s686 = sand.u32 %s142, 1
        %s687 = scalar_lea.sflag [#allocation6], %s686
        %s688 = sand.u32 %s142, 1
        %s689 = smul.addr %s688, 16
        %s690 = scalar_lea.vmem [#allocation10], %s689
        // Predicated region
        $region57: #{tpu_custom_call.1} parent=35 // pred_check
          %p691 = pneg %p152
        $region58: #{tpu_custom_call.1} parent=35 // pred_check_branch
          %693 = sbr.rel (%p691) target = $region60
        $region59: #{tpu_custom_call.1} parent=35 // pred_region
          %s695 = ssub.s32 256, 256
          %696 = vsyncadd %s687, %s695
          %s697 = smul.addr %s28, 2
          %s698 = smul.addr %s697, 128
          %s699 = scalar_lea.hbm %s4, %s698
          %s701 = sshll.u32 %s690, 4
          %s702 = int_to_ptr.vmem [resolvable:$true] %s701
          %704 = dma.vmem_to_hbm [thread:$0]  %s702, 256, %s699, %s687
        $region60: #{tpu_custom_call.1} parent=35 // pred_fallthru
          _
      $region36: #{tpu_custom_call.1} parent=5 // pred_fallthru
        _
      %p705 = scmp.le.s32.totalorder 2, %s19
      // Predicated region
      $region61: #{tpu_custom_call.1} parent=5 // pred_check
        %p706 = pneg %p705
      $region62: #{tpu_custom_call.1} parent=5 // pred_check_branch
        %708 = sbr.rel (%p706) target = $region64
      $region63: #{tpu_custom_call.1} parent=5 // pred_region
        %s709 = ssub.s32 %s19, 2
        // Predicated region
        $region65: #{tpu_custom_call.1} parent=63 // pred_check
          %p710 = pneg %p158
        $region66: #{tpu_custom_call.1} parent=63 // pred_check_branch
          %712 = sbr.rel (%p710) target = $region68
        $region67: #{tpu_custom_call.1} parent=63 // pred_region
          %s713 = sand.u32 %s143, 1
          %s714 = scalar_lea.sflag [#allocation6], %s713
          %s715 = sand.u32 %s143, 1
          %s716 = smul.addr %s715, 16
          %s717 = scalar_lea.vmem [#allocation10], %s716
          %718 = dma.done %s714, 256
        $region68: #{tpu_custom_call.1} parent=63 // pred_fallthru
          _
      $region64: #{tpu_custom_call.1} parent=5 // pred_fallthru
        _
    $region6: #{tpu_custom_call.1} parent=1 // loop_footer
      %s23 = sadd.s32 1, %s19
    $region7: #{tpu_custom_call.1} parent=1 // loop_footer_branch
      %18 = sbr.rel target = $region3
    $region8: #{tpu_custom_call.1} parent=1 // loop_exit
      _
    %719 = vsyncpa [#allocation5], 1
    %s720 = scalar_lea.sflag [#allocation5], 1
    %721 = vsyncpa %s720, 1
    %722 = vsyncpa [#allocation8], 1
    %s723 = scalar_lea.sflag [#allocation8], 1
    %724 = vsyncpa %s723, 1
    %725 = vsyncpa [#allocation6], 1
    %s726 = scalar_lea.sflag [#allocation6], 1
    %727 = vsyncpa %s726, 1

</llo_original>
